<compile_context>
chip_gen: v5e
topology: v5e:2x2
jax: 0.10.0
libtpu: 0.0.40
codegen_flags: <defaults>
</compile_context>

<pallas_src>
import jax
import jax.numpy as jnp
from jax import lax
from jax.experimental import pallas as pl
from jax.experimental.pallas import tpu as pltpu


LARGE_DIST = 1e10
GN_EPS = 1e-5  # torch.nn.GroupNorm default


def _group_avg_matrix(C, groups, hw):
    """(C, C) matrix A with A[i, j] = 1/(hw*Cg) iff channels i, j share a group.

    Turns per-channel sums into per-group means with one tiny MXU matmul
    (single-pass GroupNorm, no per-group mask loop).
    """
    Cg = C // groups
    g = jnp.arange(C, dtype=jnp.int32) // Cg
    return (g[:, None] == g[None, :]).astype(jnp.float32) / float(hw * Cg)


# ----------------------------------------------------------------------------
# Kernel 1: fused semantic_embedding (depthwise3x3 -> GN+ReLU -> 1x1 -> GN+ReLU)
# ----------------------------------------------------------------------------
def fused_semantic_embedding(x_nhwc, params, gn_groups, gn_emb_groups):
    """x_nhwc: (N, H, W, C) float32.  Returns (N, H*W, E) float32."""
    N, H, W, C = x_nhwc.shape
    E = params["emb_w"].shape[1]
    HW = H * W
    assert C % gn_groups == 0 and E % gn_emb_groups == 0

    a1 = _group_avg_matrix(C, gn_groups, HW)
    a2 = _group_avg_matrix(E, gn_emb_groups, HW)
    emb_w_bf16 = params["emb_w"].astype(jnp.bfloat16)

    # Free metadata collapse in HBM -- no halo pad, no extra memory pass.
    x_flat = x_nhwc.reshape(N, HW, C)

    # Edge masks for the +-1 column shifts (kill the roll wrap-around).
    col = jnp.arange(HW, dtype=jnp.int32) % W
    mask_l = (col > 0).astype(jnp.float32).reshape(HW, 1)
    mask_r = (col < W - 1).astype(jnp.float32).reshape(HW, 1)

    def kernel(x_ref, ml_ref, mr_ref, dww_ref, dwb_ref, a1_ref, g1_ref, b1_ref,
               ew_ref, eb_ref, a2_ref, g2_ref, b2_ref, o_ref):
        x = x_ref[0]                                              # (HW, C) f32

        # ---- depthwise 3x3, stride 1, pad 1, in flattened (HW, C) space.
        # Column shifts ride the XLU (pltpu.roll) and are hoisted once, reused
        # across the 3 row taps; row shifts are sublane-aligned zero concats.
        xl = ml_ref[...] * pltpu.roll(x, shift=1, axis=0)         # x[i, j-1]
        xr = mr_ref[...] * pltpu.roll(x, shift=HW - 1, axis=0)    # x[i, j+1]
        zW = jnp.zeros((W, C), jnp.float32)

        acc = jnp.zeros((HW, C), jnp.float32)
        for dw, xs in enumerate((xl, x, xr)):
            up = jnp.concatenate([zW, xs[:HW - W]], axis=0)       # x[i-1, j+dw-1]
            dn = jnp.concatenate([xs[W:], zW], axis=0)            # x[i+1, j+dw-1]
            acc = (acc
                   + up * dww_ref[0, dw:dw + 1, :]
                   + xs * dww_ref[1, dw:dw + 1, :]
                   + dn * dww_ref[2, dw:dw + 1, :])
        t = acc + dwb_ref[...]                                    # (HW, C)

        def gn_relu(t, a_ref, g_ref, b_ref):
            # single-pass GroupNorm: per-channel sums -> per-group stats via a
            # tiny matmul with the group-averaging matrix; then affine + ReLU.
            s = jnp.sum(t, axis=0, keepdims=True)                 # (1, C)
            ss = jnp.sum(t * t, axis=0, keepdims=True)            # (1, C)
            mean = jnp.dot(s, a_ref[...], preferred_element_type=jnp.float32)
            ex2 = jnp.dot(ss, a_ref[...], preferred_element_type=jnp.float32)
            var = jnp.maximum(ex2 - mean * mean, 0.0)
            y = (t - mean) * lax.rsqrt(var + GN_EPS) * g_ref[...] + b_ref[...]
            return jnp.maximum(y, 0.0)

        t = gn_relu(t, a1_ref, g1_ref, b1_ref)

        # ---- 1x1 conv on the MXU: bf16 operands, f32 accumulation.
        t = jnp.dot(t.astype(jnp.bfloat16), ew_ref[...],
                    preferred_element_type=jnp.float32) + eb_ref[...]

        # NOTE: with small E (<128) this store is lane-masked; lane-dense (E,HW)
        # output only pays off for toy channel widths, production E>=100 is close
        # enough to dense that we keep the (HW, E) layout the matching kernel wants.
        o_ref[0] = gn_relu(t, a2_ref, g2_ref, b2_ref)             # (HW, E)

    # Explicit VMEM budget: whole-frame block + ~10 live (HW, max(C,E)) f32 temps.
    live_words = 10 * HW * max(C, E) + 2 * HW * C + 2 * HW * E
    param_words = C * C + E * E + 2 * C * E + 16 * (C + E) + 2 * HW
    vmem_limit = int(min(48 * 2**20, max(32 * 2**20, 8 * (live_words + param_words))))
    # TODO(synk): for very large frames on v7x (64 MiB VMEM) tile H into row blocks
    # with cross-step GroupNorm stat accumulation instead of whole-frame blocks.

    return pl.pallas_call(
        kernel,
        out_shape=jax.ShapeDtypeStruct((N, HW, E), jnp.float32),
        grid=(N,),
        in_specs=[
            pl.BlockSpec((1, HW, C), lambda n: (n, 0, 0)),
            pl.BlockSpec((HW, 1), lambda n: (0, 0)),
            pl.BlockSpec((HW, 1), lambda n: (0, 0)),
            pl.BlockSpec((3, 3, C), lambda n: (0, 0, 0)),
            pl.BlockSpec((1, C), lambda n: (0, 0)),
            pl.BlockSpec((C, C), lambda n: (0, 0)),
            pl.BlockSpec((1, C), lambda n: (0, 0)),
            pl.BlockSpec((1, C), lambda n: (0, 0)),
            pl.BlockSpec((C, E), lambda n: (0, 0)),
            pl.BlockSpec((1, E), lambda n: (0, 0)),
            pl.BlockSpec((E, E), lambda n: (0, 0)),
            pl.BlockSpec((1, E), lambda n: (0, 0)),
            pl.BlockSpec((1, E), lambda n: (0, 0)),
        ],
        out_specs=pl.BlockSpec((1, HW, E), lambda n: (n, 0, 0)),
        compiler_params=pltpu.CompilerParams(
            dimension_semantics=("parallel",),
            vmem_limit_bytes=vmem_limit),
    )(
        x_flat, mask_l, mask_r,
        params["dw_w"], params["dw_b"].reshape(1, C),
        a1, params["gn1_g"].reshape(1, C), params["gn1_b"].reshape(1, C),
        emb_w_bf16, params["emb_b"].reshape(1, E),
        a2, params["gn2_g"].reshape(1, E), params["gn2_b"].reshape(1, E),
    )


# ----------------------------------------------------------------------------
# Kernel 2: batched per-object global matching, online min over reference tiles
# ----------------------------------------------------------------------------
def global_matching_batched(cur_flat, ref_flat, ref_onehot_hw_o, dis_bias,
                            tq=512, tr=2048):
    """cur_flat, ref_flat: (bs, HW, E) f32 embeddings.
    ref_onehot_hw_o: (bs, HWr, O) one-hot reference labels (bool/int).
    dis_bias:        (bs, O)      f32 [bg_bias, fg_bias, ...].
    Returns (bs, O, HWq) f32: sigmoid(clamp(min_j ||q_i - r_j||^2, 0) + bias).
    """
    bs, HWq, E = cur_flat.shape
    HWr = ref_flat.shape[1]
    O = ref_onehot_hw_o.shape[2]

    TQ = HWq if HWq <= tq else tq
    assert HWq % TQ == 0, "query spatial size must tile evenly"
    # v7x megacore: keep the (bs*nq) parallel axis at >= 2 balanced steps.
    while bs * (HWq // TQ) < 2 and TQ % 2 == 0 and TQ >= 256:
        TQ //= 2
    TR = HWr if HWr <= tr else tr
    assert HWr % TR == 0, "reference spatial size must tile evenly"
    nq, nr = HWq // TQ, HWr // TR

    # -2 fold is exact in bf16 (pure exponent shift); removes the per-step
    # (TR,TQ) VALU multiply from the kernel's saturated slot.
    qneg2_bf = (-2.0 * cur_flat).astype(jnp.bfloat16)              # (bs, HWq, E)
    r_bf = ref_flat.astype(jnp.bfloat16)                           # (bs, HWr, E)
    rr = jnp.sum(ref_flat * ref_flat, axis=2, keepdims=True)       # (bs, HWr, 1) f32
    qq = jnp.sum(cur_flat * cur_flat, axis=2)[:, None, :]          # (bs, 1, HWq) f32
    onehot_i8 = ref_onehot_hw_o.astype(jnp.int8)                   # 4x smaller DMA than f32
    bias = dis_bias[:, :, None]                                    # (bs, O, 1)

    def kernel(q_ref, r_ref, oh_ref, rr_ref, qq_ref, b_ref, o_ref, acc_ref):
        ri = pl.program_id(1)

        @pl.when(ri == 0)
        def _():
            acc_ref[...] = jnp.full(acc_ref.shape, jnp.inf, dtype=acc_ref.dtype)

        # (TR, TQ) = -2 r.q on the MXU (bf16 in, f32 accumulate).  The MXU has
        # large slack at the shallow E contraction; the per-object add/min loop
        # below is the binding (VALU/XLU) work, so that's what we keep minimal.
        rq = lax.dot_general(r_ref[0], q_ref[0],
                             dimension_numbers=(((1,), (1,)), ((), ())),
                             preferred_element_type=jnp.float32)
        base = rq + rr_ref[0]                                      # + ||r||^2 (TR,1) bcast
        # per-object wrong-label padding, built from the tiny int8 one-hot block
        rb = (1.0 - oh_ref[0].astype(jnp.float32)) * LARGE_DIST    # (TR, O)
        mins = []
        for o in range(O):                                         # static unroll, O small
            cand = base + rb[:, o:o + 1]                           # (TR, TQ)
            mins.append(jnp.min(cand, axis=0, keepdims=True))      # (1, TQ)
        # ONE unmasked (O, TQ) accumulator update instead of O row-wise RMWs.
        acc_ref[...] = jnp.minimum(acc_ref[...], jnp.concatenate(mins, axis=0))

        @pl.when(ri == pl.num_programs(1) - 1)
        def _():
            d = jnp.maximum(acc_ref[...] + qq_ref[0], 0.0)         # (O, TQ), clamp >= 0
            # TODO(synk): exact post-processing of the external global_matching()
            # (float16 path, atrous sub-sampling, chunking) is not defined in
            # aocnet.py; sigmoid(dist + dis_bias) is the standard CFBI-style form.
            o_ref[0] = jax.nn.sigmoid(d + b_ref[0])

    return pl.pallas_call(
        kernel,
        out_shape=jax.ShapeDtypeStruct((bs, O, HWq), jnp.float32),
        grid=(bs * nq, nr),                    # bs x query-tiles folded -> one parallel axis
        in_specs=[
            pl.BlockSpec((1, TQ, E), lambda i, ri: (i // nq, i % nq, 0)),
            pl.BlockSpec((1, TR, E), lambda i, ri: (i // nq, ri, 0)),
            pl.BlockSpec((1, TR, O), lambda i, ri: (i // nq, ri, 0)),
            pl.BlockSpec((1, TR, 1), lambda i, ri: (i // nq, ri, 0)),
            pl.BlockSpec((1, 1, TQ), lambda i, ri: (i // nq, 0, i % nq)),
            pl.BlockSpec((1, O, 1), lambda i, ri: (i // nq, 0, 0)),
        ],
        out_specs=pl.BlockSpec((1, O, TQ), lambda i, ri: (i // nq, 0, i % nq)),
        scratch_shapes=[pltpu.VMEM((O, TQ), jnp.float32)],
        compiler_params=pltpu.CompilerParams(
            dimension_semantics=("parallel", "arbitrary"),
            vmem_limit_bytes=32 * 1024 * 1024),
    )(qneg2_bf, r_bf, onehot_i8, rr, qq, bias)


# ----------------------------------------------------------------------------
# Glue (plain JAX): mirrors extract_feature / before_seghead_process structure
# ----------------------------------------------------------------------------
def resize_nearest(lbl, h, w):
    """PyTorch-style nearest interpolate of (bs, 1, H, W) labels to (h, w)."""
    H, W = lbl.shape[-2], lbl.shape[-1]
    ri = (jnp.arange(h) * H) // h
    ci = (jnp.arange(w) * W) // w
    return lbl[:, :, ri][:, :, :, ci]


def aocnet_forward_core(params, x_backbone_nchw, ref_label, prev_mask, gt_ids,
                        gn_groups, gn_emb_groups):
    N, C, H, W = x_backbone_nchw.shape
    E = params["emb_w"].shape[1]
    HW = H * W
    bs = N // 3

    # ---- semantic_embedding: one fused Pallas kernel over the stacked batch
    x_nhwc = jnp.transpose(x_backbone_nchw, (0, 2, 3, 1))          # NCHW -> NHWC
    emb_flat = fused_semantic_embedding(x_nhwc, params, gn_groups, gn_emb_groups)
    emb = emb_flat.reshape(N, H, W, E)                             # NHWC embedding

    ref_flat = emb_flat[:bs]                                       # (bs, HW, E)
    cur_flat = emb_flat[2 * bs:]                                   # (bs, HW, E)
    # TODO(synk): prev-frame local_matching path, attention heads, DynamicPreHead
    # and CalibrationDecoding (dynamic_seghead) are external modules (prev_mask unused).

    # ---- labels -> one-hot vs ref_obj_ids (batched over samples, fixed max O)
    scale_ref = resize_nearest(ref_label.astype(jnp.float32), H, W).astype(jnp.int32)
    obj_nums = [int(g) + 1 for g in gt_ids]
    O = max(obj_nums)
    obj_ids = jnp.arange(O, dtype=jnp.int32)
    labels_flat = scale_ref[:, 0].reshape(bs, HW)
    ref_onehot = (labels_flat[:, :, None] == obj_ids[None, None, :])   # (bs, HW, O) bool

    bg = params["bg_bias"].reshape(1)
    fg = params["fg_bias"].reshape(1)
    if O > 1:
        dis_bias = jnp.concatenate([bg, jnp.broadcast_to(fg, (O - 1,))])
    else:
        dis_bias = bg
    dis_bias = jnp.broadcast_to(dis_bias[None, :], (bs, O))        # (bs, O)

    # ---- one batched matching kernel (no per-sample Python loop / recompiles)
    gm = global_matching_batched(cur_flat, ref_flat, ref_onehot, dis_bias)  # (bs, O, HW)

    matching_maps = []
    for n in range(bs):
        o_n = obj_nums[n]
        matching_maps.append(gm[n, :o_n].reshape(o_n, H, W)[:, None])       # (O, 1, h, w)

    return emb, matching_maps


# ----------------------------------------------------------------------------
# Deterministic parameter init (shapes per AOCNet.__init__)
# ----------------------------------------------------------------------------
def init_params(key, aspp_dim, emb_dim):
    k_dw, k_emb = jax.random.split(key, 2)
    # kaiming_normal_(mode='fan_out', nonlinearity='relu')
    dw_std = (2.0 / (3 * 3 * 1)) ** 0.5            # depthwise: fan_out = 9*C/groups = 9
    emb_std = (2.0 / (1 * 1 * emb_dim)) ** 0.5
    return {
        "dw_w": dw_std * jax.random.normal(k_dw, (3, 3, aspp_dim), jnp.float32),
        "dw_b": jnp.zeros((aspp_dim,), jnp.float32),
        "gn1_g": jnp.ones((aspp_dim,), jnp.float32),
        "gn1_b": jnp.zeros((aspp_dim,), jnp.float32),
        "emb_w": emb_std * jax.random.normal(k_emb, (aspp_dim, emb_dim), jnp.float32),
        "emb_b": jnp.zeros((emb_dim,), jnp.float32),
        "gn2_g": jnp.ones((emb_dim,), jnp.float32),
        "gn2_b": jnp.zeros((emb_dim,), jnp.float32),
        "bg_bias": jnp.zeros((1, 1, 1, 1), jnp.float32),
        "fg_bias": jnp.zeros((1, 1, 1, 1), jnp.float32),
    }


if __name__ == "__main__":
    # small cfg: ASPP_OUTDIM=32, GN_GROUPS=4, EMB_DIM=32, GN_EMB_GROUPS=4
    ASPP_OUTDIM, EMB_DIM = 32, 32
    GN_GROUPS, GN_EMB_GROUPS = 4, 4
    bs, h, w = 1, 16, 16                 # backbone feature resolution
    Hin, Win = 32, 32                    # input image / mask resolution
    N = 3 * bs                           # ref / prev / current stacked on batch

    key = jax.random.PRNGKey(0)
    k_par, k_x, k_ref, k_prev = jax.random.split(key, 4)

    params = init_params(k_par, ASPP_OUTDIM, EMB_DIM)
    x_backbone = jax.random.normal(k_x, (N, ASPP_OUTDIM, h, w), jnp.float32)
    ref_label = (jax.random.uniform(k_ref, (bs, 1, Hin, Win)) > 0.5).astype(jnp.int32)
    prev_mask = (jax.random.uniform(k_prev, (bs, 1, Hin, Win)) > 0.5).astype(jnp.int32)
    gt_ids = [1]                         # one foreground object per sample

    emb, matching_maps = aocnet_forward_core(
        params, x_backbone, ref_label, prev_mask, gt_ids,
        GN_GROUPS, GN_EMB_GROUPS)

    jax.block_until_ready(emb)
    for m in matching_maps:
        jax.block_until_ready(m)
    print("KERNEL_OK")
</pallas_src>

<mosaic_0001>
module attributes {stable_mosaic.version = 11 : i64} {
  func.func @kernel(%arg0: i32, %arg1: memref<1x256x32xf32, #tpu.memory_space<vmem>>, %arg2: memref<256x1xf32, #tpu.memory_space<vmem>>, %arg3: memref<256x1xf32, #tpu.memory_space<vmem>>, %arg4: memref<3x3x32xf32, #tpu.memory_space<vmem>>, %arg5: memref<1x32xf32, #tpu.memory_space<vmem>>, %arg6: memref<32x32xf32, #tpu.memory_space<vmem>>, %arg7: memref<1x32xf32, #tpu.memory_space<vmem>>, %arg8: memref<1x32xf32, #tpu.memory_space<vmem>>, %arg9: memref<32x32xbf16, #tpu.memory_space<vmem>>, %arg10: memref<1x32xf32, #tpu.memory_space<vmem>>, %arg11: memref<32x32xf32, #tpu.memory_space<vmem>>, %arg12: memref<1x32xf32, #tpu.memory_space<vmem>>, %arg13: memref<1x32xf32, #tpu.memory_space<vmem>>, %arg14: memref<1x256x32xf32, #tpu.memory_space<vmem>>) attributes {dimension_semantics = [#tpu.dimension_semantics<parallel>], iteration_bounds = array<i64: 3>, scalar_prefetch = 0 : i64, scratch_operands = 0 : i64, tpu.core_type = #tpu.core_type<tc>, window_params = [{transform_indices = @transform_0, window_bounds = array<i64: 1, 256, 32>}, {pipeline_mode = #tpu.pipeline_mode<synchronous>, transform_indices = @transform_1, window_bounds = array<i64: 256, 1>}, {pipeline_mode = #tpu.pipeline_mode<synchronous>, transform_indices = @transform_2, window_bounds = array<i64: 256, 1>}, {pipeline_mode = #tpu.pipeline_mode<synchronous>, transform_indices = @transform_3, window_bounds = array<i64: 3, 3, 32>}, {pipeline_mode = #tpu.pipeline_mode<synchronous>, transform_indices = @transform_4, window_bounds = array<i64: 1, 32>}, {pipeline_mode = #tpu.pipeline_mode<synchronous>, transform_indices = @transform_5, window_bounds = array<i64: 32, 32>}, {pipeline_mode = #tpu.pipeline_mode<synchronous>, transform_indices = @transform_6, window_bounds = array<i64: 1, 32>}, {pipeline_mode = #tpu.pipeline_mode<synchronous>, transform_indices = @transform_7, window_bounds = array<i64: 1, 32>}, {pipeline_mode = #tpu.pipeline_mode<synchronous>, transform_indices = @transform_8, window_bounds = array<i64: 32, 32>}, {pipeline_mode = #tpu.pipeline_mode<synchronous>, transform_indices = @transform_9, window_bounds = array<i64: 1, 32>}, {pipeline_mode = #tpu.pipeline_mode<synchronous>, transform_indices = @transform_10, window_bounds = array<i64: 32, 32>}, {pipeline_mode = #tpu.pipeline_mode<synchronous>, transform_indices = @transform_11, window_bounds = array<i64: 1, 32>}, {pipeline_mode = #tpu.pipeline_mode<synchronous>, transform_indices = @transform_12, window_bounds = array<i64: 1, 32>}, {transform_indices = @transform_13, window_bounds = array<i64: 1, 256, 32>}]} {
    %c0 = arith.constant 0 : index
    %c0_0 = arith.constant 0 : index
    %c0_1 = arith.constant 0 : index
    %0 = vector.load %arg1[%c0, %c0_0, %c0_1] : memref<1x256x32xf32, #tpu.memory_space<vmem>>, vector<1x256x32xf32>
    %1 = vector.shape_cast %0 : vector<1x256x32xf32> to vector<256x32xf32>
    %c0_2 = arith.constant 0 : index
    %c0_3 = arith.constant 0 : index
    %2 = vector.load %arg2[%c0_2, %c0_3] : memref<256x1xf32, #tpu.memory_space<vmem>>, vector<256x1xf32>
    %c1_i32 = arith.constant 1 : i32
    %3 = tpu.dynamic_rotate %1 by %c1_i32 dim 0 : vector<256x32xf32>, i32 -> vector<256x32xf32>
    %4 = vector.broadcast %2 : vector<256x1xf32> to vector<256x32xf32>
    %5 = arith.mulf %4, %3 : vector<256x32xf32>
    %c0_4 = arith.constant 0 : index
    %c0_5 = arith.constant 0 : index
    %6 = vector.load %arg3[%c0_4, %c0_5] : memref<256x1xf32, #tpu.memory_space<vmem>>, vector<256x1xf32>
    %c255_i32 = arith.constant 255 : i32
    %7 = tpu.dynamic_rotate %1 by %c255_i32 dim 0 : vector<256x32xf32>, i32 -> vector<256x32xf32>
    %8 = vector.broadcast %6 : vector<256x1xf32> to vector<256x32xf32>
    %9 = arith.mulf %8, %7 : vector<256x32xf32>
    %cst = arith.constant 0.000000e+00 : f32
    %10 = vector.broadcast %cst : f32 to vector<16x32xf32>
    %cst_6 = arith.constant 0.000000e+00 : f32
    %11 = vector.broadcast %cst_6 : f32 to vector<256x32xf32>
    %12 = vector.extract_strided_slice %5 {offsets = [0, 0], sizes = [240, 32], strides = [1, 1]} : vector<256x32xf32> to vector<240x32xf32>
    %13 = tpu.concatenate %10, %12 in 0 : vector<16x32xf32>, vector<240x32xf32> -> vector<256x32xf32>
    %14 = vector.extract_strided_slice %5 {offsets = [16, 0], sizes = [240, 32], strides = [1, 1]} : vector<256x32xf32> to vector<240x32xf32>
    %15 = tpu.concatenate %14, %10 in 0 : vector<240x32xf32>, vector<16x32xf32> -> vector<256x32xf32>
    %c0_7 = arith.constant 0 : index
    %c0_8 = arith.constant 0 : index
    %c0_9 = arith.constant 0 : index
    %16 = vector.load %arg4[%c0_7, %c0_8, %c0_9] : memref<3x3x32xf32, #tpu.memory_space<vmem>>, vector<1x1x32xf32>
    %17 = vector.shape_cast %16 : vector<1x1x32xf32> to vector<1x32xf32>
    %18 = vector.broadcast %17 : vector<1x32xf32> to vector<256x32xf32>
    %19 = arith.mulf %13, %18 : vector<256x32xf32>
    %20 = arith.addf %11, %19 : vector<256x32xf32>
    %c1 = arith.constant 1 : index
    %c0_10 = arith.constant 0 : index
    %c0_11 = arith.constant 0 : index
    %21 = vector.load %arg4[%c1, %c0_10, %c0_11] : memref<3x3x32xf32, #tpu.memory_space<vmem>>, vector<1x1x32xf32>
    %22 = vector.shape_cast %21 : vector<1x1x32xf32> to vector<1x32xf32>
    %23 = vector.broadcast %22 : vector<1x32xf32> to vector<256x32xf32>
    %24 = arith.mulf %5, %23 : vector<256x32xf32>
    %25 = arith.addf %20, %24 : vector<256x32xf32>
    %c2 = arith.constant 2 : index
    %c0_12 = arith.constant 0 : index
    %c0_13 = arith.constant 0 : index
    %26 = vector.load %arg4[%c2, %c0_12, %c0_13] : memref<3x3x32xf32, #tpu.memory_space<vmem>>, vector<1x1x32xf32>
    %27 = vector.shape_cast %26 : vector<1x1x32xf32> to vector<1x32xf32>
    %28 = vector.broadcast %27 : vector<1x32xf32> to vector<256x32xf32>
    %29 = arith.mulf %15, %28 : vector<256x32xf32>
    %30 = arith.addf %25, %29 : vector<256x32xf32>
    %31 = vector.extract_strided_slice %1 {offsets = [0, 0], sizes = [240, 32], strides = [1, 1]} : vector<256x32xf32> to vector<240x32xf32>
    %32 = tpu.concatenate %10, %31 in 0 : vector<16x32xf32>, vector<240x32xf32> -> vector<256x32xf32>
    %33 = vector.extract_strided_slice %1 {offsets = [16, 0], sizes = [240, 32], strides = [1, 1]} : vector<256x32xf32> to vector<240x32xf32>
    %34 = tpu.concatenate %33, %10 in 0 : vector<240x32xf32>, vector<16x32xf32> -> vector<256x32xf32>
    %c0_14 = arith.constant 0 : index
    %c1_15 = arith.constant 1 : index
    %c0_16 = arith.constant 0 : index
    %35 = vector.load %arg4[%c0_14, %c1_15, %c0_16] : memref<3x3x32xf32, #tpu.memory_space<vmem>>, vector<1x1x32xf32>
    %36 = vector.shape_cast %35 : vector<1x1x32xf32> to vector<1x32xf32>
    %37 = vector.broadcast %36 : vector<1x32xf32> to vector<256x32xf32>
    %38 = arith.mulf %32, %37 : vector<256x32xf32>
    %39 = arith.addf %30, %38 : vector<256x32xf32>
    %c1_17 = arith.constant 1 : index
    %c1_18 = arith.constant 1 : index
    %c0_19 = arith.constant 0 : index
    %40 = vector.load %arg4[%c1_17, %c1_18, %c0_19] : memref<3x3x32xf32, #tpu.memory_space<vmem>>, vector<1x1x32xf32>
    %41 = vector.shape_cast %40 : vector<1x1x32xf32> to vector<1x32xf32>
    %42 = vector.broadcast %41 : vector<1x32xf32> to vector<256x32xf32>
    %43 = arith.mulf %1, %42 : vector<256x32xf32>
    %44 = arith.addf %39, %43 : vector<256x32xf32>
    %c2_20 = arith.constant 2 : index
    %c1_21 = arith.constant 1 : index
    %c0_22 = arith.constant 0 : index
    %45 = vector.load %arg4[%c2_20, %c1_21, %c0_22] : memref<3x3x32xf32, #tpu.memory_space<vmem>>, vector<1x1x32xf32>
    %46 = vector.shape_cast %45 : vector<1x1x32xf32> to vector<1x32xf32>
    %47 = vector.broadcast %46 : vector<1x32xf32> to vector<256x32xf32>
    %48 = arith.mulf %34, %47 : vector<256x32xf32>
    %49 = arith.addf %44, %48 : vector<256x32xf32>
    %50 = vector.extract_strided_slice %9 {offsets = [0, 0], sizes = [240, 32], strides = [1, 1]} : vector<256x32xf32> to vector<240x32xf32>
    %51 = tpu.concatenate %10, %50 in 0 : vector<16x32xf32>, vector<240x32xf32> -> vector<256x32xf32>
    %52 = vector.extract_strided_slice %9 {offsets = [16, 0], sizes = [240, 32], strides = [1, 1]} : vector<256x32xf32> to vector<240x32xf32>
    %53 = tpu.concatenate %52, %10 in 0 : vector<240x32xf32>, vector<16x32xf32> -> vector<256x32xf32>
    %c0_23 = arith.constant 0 : index
    %c2_24 = arith.constant 2 : index
    %c0_25 = arith.constant 0 : index
    %54 = vector.load %arg4[%c0_23, %c2_24, %c0_25] : memref<3x3x32xf32, #tpu.memory_space<vmem>>, vector<1x1x32xf32>
    %55 = vector.shape_cast %54 : vector<1x1x32xf32> to vector<1x32xf32>
    %56 = vector.broadcast %55 : vector<1x32xf32> to vector<256x32xf32>
    %57 = arith.mulf %51, %56 : vector<256x32xf32>
    %58 = arith.addf %49, %57 : vector<256x32xf32>
    %c1_26 = arith.constant 1 : index
    %c2_27 = arith.constant 2 : index
    %c0_28 = arith.constant 0 : index
    %59 = vector.load %arg4[%c1_26, %c2_27, %c0_28] : memref<3x3x32xf32, #tpu.memory_space<vmem>>, vector<1x1x32xf32>
    %60 = vector.shape_cast %59 : vector<1x1x32xf32> to vector<1x32xf32>
    %61 = vector.broadcast %60 : vector<1x32xf32> to vector<256x32xf32>
    %62 = arith.mulf %9, %61 : vector<256x32xf32>
    %63 = arith.addf %58, %62 : vector<256x32xf32>
    %c2_29 = arith.constant 2 : index
    %c2_30 = arith.constant 2 : index
    %c0_31 = arith.constant 0 : index
    %64 = vector.load %arg4[%c2_29, %c2_30, %c0_31] : memref<3x3x32xf32, #tpu.memory_space<vmem>>, vector<1x1x32xf32>
    %65 = vector.shape_cast %64 : vector<1x1x32xf32> to vector<1x32xf32>
    %66 = vector.broadcast %65 : vector<1x32xf32> to vector<256x32xf32>
    %67 = arith.mulf %53, %66 : vector<256x32xf32>
    %68 = arith.addf %63, %67 : vector<256x32xf32>
    %c0_32 = arith.constant 0 : index
    %c0_33 = arith.constant 0 : index
    %69 = vector.load %arg5[%c0_32, %c0_33] : memref<1x32xf32, #tpu.memory_space<vmem>>, vector<1x32xf32>
    %70 = vector.broadcast %69 : vector<1x32xf32> to vector<256x32xf32>
    %71 = arith.addf %68, %70 : vector<256x32xf32>
    %cst_34 = arith.constant dense<0.000000e+00> : vector<32xf32>
    %72 = vector.multi_reduction <add>, %71, %cst_34 [0] : vector<256x32xf32> to vector<32xf32>
    %73 = vector.shape_cast %72 : vector<32xf32> to vector<1x32xf32>
    %74 = arith.mulf %71, %71 : vector<256x32xf32>
    %cst_35 = arith.constant dense<0.000000e+00> : vector<32xf32>
    %75 = vector.multi_reduction <add>, %74, %cst_35 [0] : vector<256x32xf32> to vector<32xf32>
    %76 = vector.shape_cast %75 : vector<32xf32> to vector<1x32xf32>
    %c0_36 = arith.constant 0 : index
    %c0_37 = arith.constant 0 : index
    %77 = vector.load %arg6[%c0_36, %c0_37] : memref<32x32xf32, #tpu.memory_space<vmem>>, vector<32x32xf32>
    %cst_38 = arith.constant dense<0.000000e+00> : vector<1x32xf32>
    %78 = tpu.matmul %73, %77, %cst_38 {dimension_numbers = #tpu.dot_dimension_numbers<[1], [0], [0], [1], [0, 0, 1, 1], [], []>} : vector<1x32xf32>, vector<32x32xf32>, vector<1x32xf32> -> vector<1x32xf32>
    %c0_39 = arith.constant 0 : index
    %c0_40 = arith.constant 0 : index
    %79 = vector.load %arg6[%c0_39, %c0_40] : memref<32x32xf32, #tpu.memory_space<vmem>>, vector<32x32xf32>
    %cst_41 = arith.constant dense<0.000000e+00> : vector<1x32xf32>
    %80 = tpu.matmul %76, %79, %cst_41 {dimension_numbers = #tpu.dot_dimension_numbers<[1], [0], [0], [1], [0, 0, 1, 1], [], []>} : vector<1x32xf32>, vector<32x32xf32>, vector<1x32xf32> -> vector<1x32xf32>
    %81 = arith.mulf %78, %78 : vector<1x32xf32>
    %82 = arith.subf %80, %81 : vector<1x32xf32>
    %cst_42 = arith.constant 0.000000e+00 : f32
    %83 = vector.broadcast %cst_42 : f32 to vector<1x32xf32>
    %84 = arith.maximumf %82, %83 : vector<1x32xf32>
    %85 = vector.broadcast %78 : vector<1x32xf32> to vector<256x32xf32>
    %86 = arith.subf %71, %85 : vector<256x32xf32>
    %cst_43 = arith.constant 9.99999974E-6 : f32
    %87 = vector.broadcast %cst_43 : f32 to vector<1x32xf32>
    %88 = arith.addf %84, %87 : vector<1x32xf32>
    %89 = math.rsqrt %88 : vector<1x32xf32>
    %90 = vector.broadcast %89 : vector<1x32xf32> to vector<256x32xf32>
    %91 = arith.mulf %86, %90 : vector<256x32xf32>
    %c0_44 = arith.constant 0 : index
    %c0_45 = arith.constant 0 : index
    %92 = vector.load %arg7[%c0_44, %c0_45] : memref<1x32xf32, #tpu.memory_space<vmem>>, vector<1x32xf32>
    %93 = vector.broadcast %92 : vector<1x32xf32> to vector<256x32xf32>
    %94 = arith.mulf %91, %93 : vector<256x32xf32>
    %c0_46 = arith.constant 0 : index
    %c0_47 = arith.constant 0 : index
    %95 = vector.load %arg8[%c0_46, %c0_47] : memref<1x32xf32, #tpu.memory_space<vmem>>, vector<1x32xf32>
    %96 = vector.broadcast %95 : vector<1x32xf32> to vector<256x32xf32>
    %97 = arith.addf %94, %96 : vector<256x32xf32>
    %cst_48 = arith.constant 0.000000e+00 : f32
    %98 = vector.broadcast %cst_48 : f32 to vector<256x32xf32>
    %99 = arith.maximumf %97, %98 : vector<256x32xf32>
    %100 = arith.truncf %99 : vector<256x32xf32> to vector<256x32xbf16>
    %c0_49 = arith.constant 0 : index
    %c0_50 = arith.constant 0 : index
    %101 = vector.load %arg9[%c0_49, %c0_50] : memref<32x32xbf16, #tpu.memory_space<vmem>>, vector<32x32xbf16>
    %cst_51 = arith.constant dense<0.000000e+00> : vector<256x32xf32>
    %102 = tpu.matmul %100, %101, %cst_51 {dimension_numbers = #tpu.dot_dimension_numbers<[1], [0], [0], [1], [0, 0, 1, 1], [], []>} : vector<256x32xbf16>, vector<32x32xbf16>, vector<256x32xf32> -> vector<256x32xf32>
    %c0_52 = arith.constant 0 : index
    %c0_53 = arith.constant 0 : index
    %103 = vector.load %arg10[%c0_52, %c0_53] : memref<1x32xf32, #tpu.memory_space<vmem>>, vector<1x32xf32>
    %104 = vector.broadcast %103 : vector<1x32xf32> to vector<256x32xf32>
    %105 = arith.addf %102, %104 : vector<256x32xf32>
    %cst_54 = arith.constant dense<0.000000e+00> : vector<32xf32>
    %106 = vector.multi_reduction <add>, %105, %cst_54 [0] : vector<256x32xf32> to vector<32xf32>
    %107 = vector.shape_cast %106 : vector<32xf32> to vector<1x32xf32>
    %108 = arith.mulf %105, %105 : vector<256x32xf32>
    %cst_55 = arith.constant dense<0.000000e+00> : vector<32xf32>
    %109 = vector.multi_reduction <add>, %108, %cst_55 [0] : vector<256x32xf32> to vector<32xf32>
    %110 = vector.shape_cast %109 : vector<32xf32> to vector<1x32xf32>
    %c0_56 = arith.constant 0 : index
    %c0_57 = arith.constant 0 : index
    %111 = vector.load %arg11[%c0_56, %c0_57] : memref<32x32xf32, #tpu.memory_space<vmem>>, vector<32x32xf32>
    %cst_58 = arith.constant dense<0.000000e+00> : vector<1x32xf32>
    %112 = tpu.matmul %107, %111, %cst_58 {dimension_numbers = #tpu.dot_dimension_numbers<[1], [0], [0], [1], [0, 0, 1, 1], [], []>} : vector<1x32xf32>, vector<32x32xf32>, vector<1x32xf32> -> vector<1x32xf32>
    %c0_59 = arith.constant 0 : index
    %c0_60 = arith.constant 0 : index
    %113 = vector.load %arg11[%c0_59, %c0_60] : memref<32x32xf32, #tpu.memory_space<vmem>>, vector<32x32xf32>
    %cst_61 = arith.constant dense<0.000000e+00> : vector<1x32xf32>
    %114 = tpu.matmul %110, %113, %cst_61 {dimension_numbers = #tpu.dot_dimension_numbers<[1], [0], [0], [1], [0, 0, 1, 1], [], []>} : vector<1x32xf32>, vector<32x32xf32>, vector<1x32xf32> -> vector<1x32xf32>
    %115 = arith.mulf %112, %112 : vector<1x32xf32>
    %116 = arith.subf %114, %115 : vector<1x32xf32>
    %cst_62 = arith.constant 0.000000e+00 : f32
    %117 = vector.broadcast %cst_62 : f32 to vector<1x32xf32>
    %118 = arith.maximumf %116, %117 : vector<1x32xf32>
    %119 = vector.broadcast %112 : vector<1x32xf32> to vector<256x32xf32>
    %120 = arith.subf %105, %119 : vector<256x32xf32>
    %cst_63 = arith.constant 9.99999974E-6 : f32
    %121 = vector.broadcast %cst_63 : f32 to vector<1x32xf32>
    %122 = arith.addf %118, %121 : vector<1x32xf32>
    %123 = math.rsqrt %122 : vector<1x32xf32>
    %124 = vector.broadcast %123 : vector<1x32xf32> to vector<256x32xf32>
    %125 = arith.mulf %120, %124 : vector<256x32xf32>
    %c0_64 = arith.constant 0 : index
    %c0_65 = arith.constant 0 : index
    %126 = vector.load %arg12[%c0_64, %c0_65] : memref<1x32xf32, #tpu.memory_space<vmem>>, vector<1x32xf32>
    %127 = vector.broadcast %126 : vector<1x32xf32> to vector<256x32xf32>
    %128 = arith.mulf %125, %127 : vector<256x32xf32>
    %c0_66 = arith.constant 0 : index
    %c0_67 = arith.constant 0 : index
    %129 = vector.load %arg13[%c0_66, %c0_67] : memref<1x32xf32, #tpu.memory_space<vmem>>, vector<1x32xf32>
    %130 = vector.broadcast %129 : vector<1x32xf32> to vector<256x32xf32>
    %131 = arith.addf %128, %130 : vector<256x32xf32>
    %cst_68 = arith.constant 0.000000e+00 : f32
    %132 = vector.broadcast %cst_68 : f32 to vector<256x32xf32>
    %133 = arith.maximumf %131, %132 : vector<256x32xf32>
    %c0_69 = arith.constant 0 : index
    %c0_70 = arith.constant 0 : index
    %c0_71 = arith.constant 0 : index
    %134 = vector.load %arg14[%c0_69, %c0_70, %c0_71] : memref<1x256x32xf32, #tpu.memory_space<vmem>>, vector<1x256x32xf32>
    %135 = vector.shape_cast %134 : vector<1x256x32xf32> to vector<256x32xf32>
    %136 = vector.shape_cast %133 : vector<256x32xf32> to vector<1x256x32xf32>
    tpu.vector_store %arg14[%c0_69, %c0_70, %c0_71], %136 {strides = array<i32>} : memref<1x256x32xf32, #tpu.memory_space<vmem>>, vector<1x256x32xf32>,
    return
  }
  func.func @transform_0(%arg0: i32) -> (i32, i32, i32) {
    %c0_i32 = arith.constant 0 : i32
    %c0_i32_0 = arith.constant 0 : i32
    %c0_i32_1 = arith.constant 0 : i32
    return %arg0, %c0_i32, %c0_i32_0 : i32, i32, i32
  }
  func.func @transform_1(%arg0: i32) -> (i32, i32) {
    %c0_i32 = arith.constant 0 : i32
    %c0_i32_0 = arith.constant 0 : i32
    %c0_i32_1 = arith.constant 0 : i32
    return %c0_i32, %c0_i32_0 : i32, i32
  }
  func.func @transform_2(%arg0: i32) -> (i32, i32) {
    %c0_i32 = arith.constant 0 : i32
    %c0_i32_0 = arith.constant 0 : i32
    %c0_i32_1 = arith.constant 0 : i32
    return %c0_i32, %c0_i32_0 : i32, i32
  }
  func.func @transform_3(%arg0: i32) -> (i32, i32, i32) {
    %c0_i32 = arith.constant 0 : i32
    %c0_i32_0 = arith.constant 0 : i32
    %c0_i32_1 = arith.constant 0 : i32
    %c0_i32_2 = arith.constant 0 : i32
    return %c0_i32, %c0_i32_0, %c0_i32_1 : i32, i32, i32
  }
  func.func @transform_4(%arg0: i32) -> (i32, i32) {
    %c0_i32 = arith.constant 0 : i32
    %c0_i32_0 = arith.constant 0 : i32
    %c0_i32_1 = arith.constant 0 : i32
    return %c0_i32, %c0_i32_0 : i32, i32
  }
  func.func @transform_5(%arg0: i32) -> (i32, i32) {
    %c0_i32 = arith.constant 0 : i32
    %c0_i32_0 = arith.constant 0 : i32
    %c0_i32_1 = arith.constant 0 : i32
    return %c0_i32, %c0_i32_0 : i32, i32
  }
  func.func @transform_6(%arg0: i32) -> (i32, i32) {
    %c0_i32 = arith.constant 0 : i32
    %c0_i32_0 = arith.constant 0 : i32
    %c0_i32_1 = arith.constant 0 : i32
    return %c0_i32, %c0_i32_0 : i32, i32
  }
  func.func @transform_7(%arg0: i32) -> (i32, i32) {
    %c0_i32 = arith.constant 0 : i32
    %c0_i32_0 = arith.constant 0 : i32
    %c0_i32_1 = arith.constant 0 : i32
    return %c0_i32, %c0_i32_0 : i32, i32
  }
  func.func @transform_8(%arg0: i32) -> (i32, i32) {
    %c0_i32 = arith.constant 0 : i32
    %c0_i32_0 = arith.constant 0 : i32
    %c0_i32_1 = arith.constant 0 : i32
    return %c0_i32, %c0_i32_0 : i32, i32
  }
  func.func @transform_9(%arg0: i32) -> (i32, i32) {
    %c0_i32 = arith.constant 0 : i32
    %c0_i32_0 = arith.constant 0 : i32
    %c0_i32_1 = arith.constant 0 : i32
    return %c0_i32, %c0_i32_0 : i32, i32
  }
  func.func @transform_10(%arg0: i32) -> (i32, i32) {
    %c0_i32 = arith.constant 0 : i32
    %c0_i32_0 = arith.constant 0 : i32
    %c0_i32_1 = arith.constant 0 : i32
    return %c0_i32, %c0_i32_0 : i32, i32
  }
  func.func @transform_11(%arg0: i32) -> (i32, i32) {
    %c0_i32 = arith.constant 0 : i32
    %c0_i32_0 = arith.constant 0 : i32
    %c0_i32_1 = arith.constant 0 : i32
    return %c0_i32, %c0_i32_0 : i32, i32
  }
  func.func @transform_12(%arg0: i32) -> (i32, i32) {
    %c0_i32 = arith.constant 0 : i32
    %c0_i32_0 = arith.constant 0 : i32
    %c0_i32_1 = arith.constant 0 : i32
    return %c0_i32, %c0_i32_0 : i32, i32
  }
  func.func @transform_13(%arg0: i32) -> (i32, i32, i32) {
    %c0_i32 = arith.constant 0 : i32
    %c0_i32_0 = arith.constant 0 : i32
    %c0_i32_1 = arith.constant 0 : i32
    return %arg0, %c0_i32, %c0_i32_0 : i32, i32, i32
  }
}

</mosaic_0001>

<llo_original>
// kernel: tpu_custom_call.1
$region0: #{tpu_custom_call.1}
  #allocation0 [shape = 'u32[]', space=smem, size = 0x4, offset = 0x4, fixed_abs, tag = 'smem constant byte address 0x4 - core index']
  #allocation1 [shape = 'u32[72,128]{1,0:T(1,128)}', space=vmem, size = 0x9000, scoped, tag = 'internal scratch']
  %s0 = inlined_call_operand.vmem [shape: f32[3,256,32], index: 0, kind: input, shape index: {}]
  %s1 = inlined_call_operand.vmem [shape: f32[256,1], index: 1, kind: input, shape index: {}]
  %s2 = inlined_call_operand.vmem [shape: f32[256,1], index: 2, kind: input, shape index: {}]
  %s3 = inlined_call_operand.vmem [shape: f32[3,3,32], index: 3, kind: input, shape index: {}]
  %s4 = inlined_call_operand.vmem [shape: f32[1,32], index: 4, kind: input, shape index: {}]
  %s5 = inlined_call_operand.vmem [shape: f32[32,32], index: 5, kind: input, shape index: {}]
  %s6 = inlined_call_operand.vmem [shape: f32[1,32], index: 6, kind: input, shape index: {}]
  %s7 = inlined_call_operand.vmem [shape: f32[1,32], index: 7, kind: input, shape index: {}]
  %s8 = inlined_call_operand.vmem [shape: bf16[32,32], index: 8, kind: input, shape index: {}]
  %s9 = inlined_call_operand.vmem [shape: f32[1,32], index: 9, kind: input, shape index: {}]
  %s10 = inlined_call_operand.vmem [shape: f32[32,32], index: 10, kind: input, shape index: {}]
  %s11 = inlined_call_operand.vmem [shape: f32[1,32], index: 11, kind: input, shape index: {}]
  %s12 = inlined_call_operand.vmem [shape: f32[1,32], index: 12, kind: input, shape index: {}]
  %s13 = inlined_call_operand.vmem [shape: f32[3,256,32], index: 13, kind: output, shape index: {}]
  %s14 = sld [smem:[#allocation0]]
  $region85: #{tpu_custom_call.1} parent=0
    _
  %s16 = ssub.s32 1, %s14
  %s17 = scalar_select 0, %s16, %s14
  loop: start=0, step=1, limit=5
  $region2: #{tpu_custom_call.1} parent=0 // loop_pre_header
    _
  $region3: #{tpu_custom_call.1} parent=0 // loop_header
    %s19 = sphi 0, %s23
    %p20 = scmp.ge.s32.totalorder %s19, 5
    %s29 = sphi 0, %s31
    %s32 = sphi 0, %s29
    %s33 = sphi 0, %s32
    %s49 = sphi 0, %s33
    %s53 = sphi 0, %s53
    %s55 = sphi 0, %s53
    %s56 = sphi 0, %s55
    %s70 = sphi 0, %s56
    %s74 = sphi 0, %s74
    %s76 = sphi 0, %s74
    %s77 = sphi 0, %s76
    %s91 = sphi 0, %s77
    %s95 = sphi 0, %s95
    %s97 = sphi 0, %s95
    %s98 = sphi 0, %s97
    %s112 = sphi 0, %s98
    %s116 = sphi 0, %s116
    %s118 = sphi 0, %s116
    %s119 = sphi 0, %s118
    %s133 = sphi 0, %s119
    %s137 = sphi 0, %s137
    %s139 = sphi 0, %s137
    %s140 = sphi 0, %s139
    %s154 = sphi 0, %s140
    %s158 = sphi 0, %s158
    %s160 = sphi 0, %s158
    %s161 = sphi 0, %s160
    %s175 = sphi 0, %s161
    %s179 = sphi 0, %s179
    %s181 = sphi 0, %s179
    %s182 = sphi 0, %s181
    %s196 = sphi 0, %s182
    %s200 = sphi 0, %s200
    %s202 = sphi 0, %s200
    %s203 = sphi 0, %s202
    %s217 = sphi 0, %s203
    %s221 = sphi 0, %s221
    %s223 = sphi 0, %s221
    %s224 = sphi 0, %s223
    %s238 = sphi 0, %s224
    %s242 = sphi 0, %s242
    %s244 = sphi 0, %s242
    %s245 = sphi 0, %s244
    %s259 = sphi 0, %s245
    %s263 = sphi 0, %s263
    %s265 = sphi 0, %s263
    %s266 = sphi 0, %s265
    %s280 = sphi 0, %s266
    %s284 = sphi 0, %s284
    %s286 = sphi 0, %s284
    %s287 = sphi 0, %s286
    %s301 = sphi 0, %s287
    %s307 = sphi 0, %s309
    %s310 = sphi 0, %s307
    %s311 = sphi 0, %s310
    %s327 = sphi 0, %s311
  $region4: #{tpu_custom_call.1} parent=0 // loop_header_branch
    %22 = sbr.rel (%p20) target = $region8
  $region5: #{tpu_custom_call.1} parent=0 // loop_body
    %s24 = ssub.s32 %s19, 1
    %s25 = ssub.s32 %s19, 2
    %s26 = sadd.s32 %s19, 1
    %s27 = ssub.s32 %s19, %s26
    %p28 = scmp.eq.s32.totalorder %s27, 0
    %s30 = sadd.s32 %s29, 1
    %s31 = scalar_select %p28, %s29, %s30
    %p34 = pneg %p28
    %p35 = scmp.eq.s32.totalorder %s19, 2
    %p36 = por %p34, %p35
    %p37 = scmp.ne.s32.totalorder %s29, %s32
    %p38 = scmp.eq.s32.totalorder %s19, 0
    %p39 = por %p37, %p38
    %p40 = scmp.ne.s32.totalorder %s29, %s32
    %p41 = scmp.eq.s32.totalorder %s24, 2
    %p42 = por %p40, %p41
    %p43 = scmp.ne.s32.totalorder %s32, %s33
    %p44 = scmp.eq.s32.totalorder %s24, 0
    %p45 = por %p43, %p44
    %p46 = scmp.ne.s32.totalorder %s32, %s33
    %p47 = scmp.eq.s32.totalorder %s25, 2
    %p48 = por %p46, %p47
    %p50 = scmp.ne.s32.totalorder %s33, %s49
    %p51 = scmp.eq.s32.totalorder %s25, 0
    %p52 = por %p50, %p51
    %s54 = sadd.s32 %s53, 1
    %p57 = scmp.eq.s32.totalorder %s19, 2
    %p58 = scmp.ne.s32.totalorder %s53, %s55
    %p59 = scmp.eq.s32.totalorder %s19, 0
    %p60 = por %p58, %p59
    %p61 = scmp.ne.s32.totalorder %s53, %s55
    %p62 = scmp.eq.s32.totalorder %s24, 2
    %p63 = por %p61, %p62
    %p64 = scmp.ne.s32.totalorder %s55, %s56
    %p65 = scmp.eq.s32.totalorder %s24, 0
    %p66 = por %p64, %p65
    %p67 = scmp.ne.s32.totalorder %s55, %s56
    %p68 = scmp.eq.s32.totalorder %s25, 2
    %p69 = por %p67, %p68
    %p71 = scmp.ne.s32.totalorder %s56, %s70
    %p72 = scmp.eq.s32.totalorder %s25, 0
    %p73 = por %p71, %p72
    %s75 = sadd.s32 %s74, 1
    %p78 = scmp.eq.s32.totalorder %s19, 2
    %p79 = scmp.ne.s32.totalorder %s74, %s76
    %p80 = scmp.eq.s32.totalorder %s19, 0
    %p81 = por %p79, %p80
    %p82 = scmp.ne.s32.totalorder %s74, %s76
    %p83 = scmp.eq.s32.totalorder %s24, 2
    %p84 = por %p82, %p83
    %p85 = scmp.ne.s32.totalorder %s76, %s77
    %p86 = scmp.eq.s32.totalorder %s24, 0
    %p87 = por %p85, %p86
    %p88 = scmp.ne.s32.totalorder %s76, %s77
    %p89 = scmp.eq.s32.totalorder %s25, 2
    %p90 = por %p88, %p89
    %p92 = scmp.ne.s32.totalorder %s77, %s91
    %p93 = scmp.eq.s32.totalorder %s25, 0
    %p94 = por %p92, %p93
    %s96 = sadd.s32 %s95, 1
    %p99 = scmp.eq.s32.totalorder %s19, 2
    %p100 = scmp.ne.s32.totalorder %s95, %s97
    %p101 = scmp.eq.s32.totalorder %s19, 0
    %p102 = por %p100, %p101
    %p103 = scmp.ne.s32.totalorder %s95, %s97
    %p104 = scmp.eq.s32.totalorder %s24, 2
    %p105 = por %p103, %p104
    %p106 = scmp.ne.s32.totalorder %s97, %s98
    %p107 = scmp.eq.s32.totalorder %s24, 0
    %p108 = por %p106, %p107
    %p109 = scmp.ne.s32.totalorder %s97, %s98
    %p110 = scmp.eq.s32.totalorder %s25, 2
    %p111 = por %p109, %p110
    %p113 = scmp.ne.s32.totalorder %s98, %s112
    %p114 = scmp.eq.s32.totalorder %s25, 0
    %p115 = por %p113, %p114
    %s117 = sadd.s32 %s116, 1
    %p120 = scmp.eq.s32.totalorder %s19, 2
    %p121 = scmp.ne.s32.totalorder %s116, %s118
    %p122 = scmp.eq.s32.totalorder %s19, 0
    %p123 = por %p121, %p122
    %p124 = scmp.ne.s32.totalorder %s116, %s118
    %p125 = scmp.eq.s32.totalorder %s24, 2
    %p126 = por %p124, %p125
    %p127 = scmp.ne.s32.totalorder %s118, %s119
    %p128 = scmp.eq.s32.totalorder %s24, 0
    %p129 = por %p127, %p128
    %p130 = scmp.ne.s32.totalorder %s118, %s119
    %p131 = scmp.eq.s32.totalorder %s25, 2
    %p132 = por %p130, %p131
    %p134 = scmp.ne.s32.totalorder %s119, %s133
    %p135 = scmp.eq.s32.totalorder %s25, 0
    %p136 = por %p134, %p135
    %s138 = sadd.s32 %s137, 1
    %p141 = scmp.eq.s32.totalorder %s19, 2
    %p142 = scmp.ne.s32.totalorder %s137, %s139
    %p143 = scmp.eq.s32.totalorder %s19, 0
    %p144 = por %p142, %p143
    %p145 = scmp.ne.s32.totalorder %s137, %s139
    %p146 = scmp.eq.s32.totalorder %s24, 2
    %p147 = por %p145, %p146
    %p148 = scmp.ne.s32.totalorder %s139, %s140
    %p149 = scmp.eq.s32.totalorder %s24, 0
    %p150 = por %p148, %p149
    %p151 = scmp.ne.s32.totalorder %s139, %s140
    %p152 = scmp.eq.s32.totalorder %s25, 2
    %p153 = por %p151, %p152
    %p155 = scmp.ne.s32.totalorder %s140, %s154
    %p156 = scmp.eq.s32.totalorder %s25, 0
    %p157 = por %p155, %p156
    %s159 = sadd.s32 %s158, 1
    %p162 = scmp.eq.s32.totalorder %s19, 2
    %p163 = scmp.ne.s32.totalorder %s158, %s160
    %p164 = scmp.eq.s32.totalorder %s19, 0
    %p165 = por %p163, %p164
    %p166 = scmp.ne.s32.totalorder %s158, %s160
    %p167 = scmp.eq.s32.totalorder %s24, 2
    %p168 = por %p166, %p167
    %p169 = scmp.ne.s32.totalorder %s160, %s161
    %p170 = scmp.eq.s32.totalorder %s24, 0
    %p171 = por %p169, %p170
    %p172 = scmp.ne.s32.totalorder %s160, %s161
    %p173 = scmp.eq.s32.totalorder %s25, 2
    %p174 = por %p172, %p173
    %p176 = scmp.ne.s32.totalorder %s161, %s175
    %p177 = scmp.eq.s32.totalorder %s25, 0
    %p178 = por %p176, %p177
    %s180 = sadd.s32 %s179, 1
    %p183 = scmp.eq.s32.totalorder %s19, 2
    %p184 = scmp.ne.s32.totalorder %s179, %s181
    %p185 = scmp.eq.s32.totalorder %s19, 0
    %p186 = por %p184, %p185
    %p187 = scmp.ne.s32.totalorder %s179, %s181
    %p188 = scmp.eq.s32.totalorder %s24, 2
    %p189 = por %p187, %p188
    %p190 = scmp.ne.s32.totalorder %s181, %s182
    %p191 = scmp.eq.s32.totalorder %s24, 0
    %p192 = por %p190, %p191
    %p193 = scmp.ne.s32.totalorder %s181, %s182
    %p194 = scmp.eq.s32.totalorder %s25, 2
    %p195 = por %p193, %p194
    %p197 = scmp.ne.s32.totalorder %s182, %s196
    %p198 = scmp.eq.s32.totalorder %s25, 0
    %p199 = por %p197, %p198
    %s201 = sadd.s32 %s200, 1
    %p204 = scmp.eq.s32.totalorder %s19, 2
    %p205 = scmp.ne.s32.totalorder %s200, %s202
    %p206 = scmp.eq.s32.totalorder %s19, 0
    %p207 = por %p205, %p206
    %p208 = scmp.ne.s32.totalorder %s200, %s202
    %p209 = scmp.eq.s32.totalorder %s24, 2
    %p210 = por %p208, %p209
    %p211 = scmp.ne.s32.totalorder %s202, %s203
    %p212 = scmp.eq.s32.totalorder %s24, 0
    %p213 = por %p211, %p212
    %p214 = scmp.ne.s32.totalorder %s202, %s203
    %p215 = scmp.eq.s32.totalorder %s25, 2
    %p216 = por %p214, %p215
    %p218 = scmp.ne.s32.totalorder %s203, %s217
    %p219 = scmp.eq.s32.totalorder %s25, 0
    %p220 = por %p218, %p219
    %s222 = sadd.s32 %s221, 1
    %p225 = scmp.eq.s32.totalorder %s19, 2
    %p226 = scmp.ne.s32.totalorder %s221, %s223
    %p227 = scmp.eq.s32.totalorder %s19, 0
    %p228 = por %p226, %p227
    %p229 = scmp.ne.s32.totalorder %s221, %s223
    %p230 = scmp.eq.s32.totalorder %s24, 2
    %p231 = por %p229, %p230
    %p232 = scmp.ne.s32.totalorder %s223, %s224
    %p233 = scmp.eq.s32.totalorder %s24, 0
    %p234 = por %p232, %p233
    %p235 = scmp.ne.s32.totalorder %s223, %s224
    %p236 = scmp.eq.s32.totalorder %s25, 2
    %p237 = por %p235, %p236
    %p239 = scmp.ne.s32.totalorder %s224, %s238
    %p240 = scmp.eq.s32.totalorder %s25, 0
    %p241 = por %p239, %p240
    %s243 = sadd.s32 %s242, 1
    %p246 = scmp.eq.s32.totalorder %s19, 2
    %p247 = scmp.ne.s32.totalorder %s242, %s244
    %p248 = scmp.eq.s32.totalorder %s19, 0
    %p249 = por %p247, %p248
    %p250 = scmp.ne.s32.totalorder %s242, %s244
    %p251 = scmp.eq.s32.totalorder %s24, 2
    %p252 = por %p250, %p251
    %p253 = scmp.ne.s32.totalorder %s244, %s245
    %p254 = scmp.eq.s32.totalorder %s24, 0
    %p255 = por %p253, %p254
    %p256 = scmp.ne.s32.totalorder %s244, %s245
    %p257 = scmp.eq.s32.totalorder %s25, 2
    %p258 = por %p256, %p257
    %p260 = scmp.ne.s32.totalorder %s245, %s259
    %p261 = scmp.eq.s32.totalorder %s25, 0
    %p262 = por %p260, %p261
    %s264 = sadd.s32 %s263, 1
    %p267 = scmp.eq.s32.totalorder %s19, 2
    %p268 = scmp.ne.s32.totalorder %s263, %s265
    %p269 = scmp.eq.s32.totalorder %s19, 0
    %p270 = por %p268, %p269
    %p271 = scmp.ne.s32.totalorder %s263, %s265
    %p272 = scmp.eq.s32.totalorder %s24, 2
    %p273 = por %p271, %p272
    %p274 = scmp.ne.s32.totalorder %s265, %s266
    %p275 = scmp.eq.s32.totalorder %s24, 0
    %p276 = por %p274, %p275
    %p277 = scmp.ne.s32.totalorder %s265, %s266
    %p278 = scmp.eq.s32.totalorder %s25, 2
    %p279 = por %p277, %p278
    %p281 = scmp.ne.s32.totalorder %s266, %s280
    %p282 = scmp.eq.s32.totalorder %s25, 0
    %p283 = por %p281, %p282
    %s285 = sadd.s32 %s284, 1
    %p288 = scmp.eq.s32.totalorder %s19, 2
    %p289 = scmp.ne.s32.totalorder %s284, %s286
    %p290 = scmp.eq.s32.totalorder %s19, 0
    %p291 = por %p289, %p290
    %p292 = scmp.ne.s32.totalorder %s284, %s286
    %p293 = scmp.eq.s32.totalorder %s24, 2
    %p294 = por %p292, %p293
    %p295 = scmp.ne.s32.totalorder %s286, %s287
    %p296 = scmp.eq.s32.totalorder %s24, 0
    %p297 = por %p295, %p296
    %p298 = scmp.ne.s32.totalorder %s286, %s287
    %p299 = scmp.eq.s32.totalorder %s25, 2
    %p300 = por %p298, %p299
    %p302 = scmp.ne.s32.totalorder %s287, %s301
    %p303 = scmp.eq.s32.totalorder %s25, 0
    %p304 = por %p302, %p303
    %s305 = ssub.s32 %s19, %s26
    %p306 = scmp.eq.s32.totalorder %s305, 0
    %s308 = sadd.s32 %s307, 1
    %s309 = scalar_select %p306, %s307, %s308
    %p312 = pneg %p306
    %p313 = scmp.eq.s32.totalorder %s19, 2
    %p314 = por %p312, %p313
    %p315 = scmp.ne.s32.totalorder %s307, %s310
    %p316 = scmp.eq.s32.totalorder %s19, 0
    %p317 = por %p315, %p316
    %p318 = scmp.ne.s32.totalorder %s307, %s310
    %p319 = scmp.eq.s32.totalorder %s24, 2
    %p320 = por %p318, %p319
    %p321 = scmp.ne.s32.totalorder %s310, %s311
    %p322 = scmp.eq.s32.totalorder %s24, 0
    %p323 = por %p321, %p322
    %p324 = scmp.ne.s32.totalorder %s310, %s311
    %p325 = scmp.eq.s32.totalorder %s25, 2
    %p326 = por %p324, %p325
    %p328 = scmp.ne.s32.totalorder %s311, %s327
    %p329 = scmp.eq.s32.totalorder %s25, 0
    %p330 = por %p328, %p329
    %p331 = scmp.le.s32.totalorder 1, %s19
    %p332 = scmp.lt.s32.totalorder %s19, 4
    %p333 = pnand %p331, %p332
    %p334 = pneg %p333
    // Predicated region
    $region9: #{tpu_custom_call.1} parent=5 // pred_check
      _
    $region10: #{tpu_custom_call.1} parent=5 // pred_check_branch
      %336 = sbr.rel (%p333) target = $region12
    $region11: #{tpu_custom_call.1} parent=5 // pred_region
      %s337 = ssub.s32 %s19, 1
      // Predicated region
      $region13: #{tpu_custom_call.1} parent=11 // pred_check
        %p338 = pneg %p66
      $region14: #{tpu_custom_call.1} parent=11 // pred_check_branch
        %340 = sbr.rel (%p338) target = $region16
      $region15: #{tpu_custom_call.1} parent=11 // pred_region
        _
      $region16: #{tpu_custom_call.1} parent=11 // pred_fallthru
        _
      // Predicated region
      $region17: #{tpu_custom_call.1} parent=11 // pred_check
        %p341 = pneg %p87
      $region18: #{tpu_custom_call.1} parent=11 // pred_check_branch
        %343 = sbr.rel (%p341) target = $region20
      $region19: #{tpu_custom_call.1} parent=11 // pred_region
        _
      $region20: #{tpu_custom_call.1} parent=11 // pred_fallthru
        _
      // Predicated region
      $region21: #{tpu_custom_call.1} parent=11 // pred_check
        %p344 = pneg %p108
      $region22: #{tpu_custom_call.1} parent=11 // pred_check_branch
        %346 = sbr.rel (%p344) target = $region24
      $region23: #{tpu_custom_call.1} parent=11 // pred_region
        _
      $region24: #{tpu_custom_call.1} parent=11 // pred_fallthru
        _
      // Predicated region
      $region25: #{tpu_custom_call.1} parent=11 // pred_check
        %p347 = pneg %p129
      $region26: #{tpu_custom_call.1} parent=11 // pred_check_branch
        %349 = sbr.rel (%p347) target = $region28
      $region27: #{tpu_custom_call.1} parent=11 // pred_region
        _
      $region28: #{tpu_custom_call.1} parent=11 // pred_fallthru
        _
      // Predicated region
      $region29: #{tpu_custom_call.1} parent=11 // pred_check
        %p350 = pneg %p150
      $region30: #{tpu_custom_call.1} parent=11 // pred_check_branch
        %352 = sbr.rel (%p350) target = $region32
      $region31: #{tpu_custom_call.1} parent=11 // pred_region
        _
      $region32: #{tpu_custom_call.1} parent=11 // pred_fallthru
        _
      // Predicated region
      $region33: #{tpu_custom_call.1} parent=11 // pred_check
        %p353 = pneg %p171
      $region34: #{tpu_custom_call.1} parent=11 // pred_check_branch
        %355 = sbr.rel (%p353) target = $region36
      $region35: #{tpu_custom_call.1} parent=11 // pred_region
        _
      $region36: #{tpu_custom_call.1} parent=11 // pred_fallthru
        _
      // Predicated region
      $region37: #{tpu_custom_call.1} parent=11 // pred_check
        %p356 = pneg %p192
      $region38: #{tpu_custom_call.1} parent=11 // pred_check_branch
        %358 = sbr.rel (%p356) target = $region40
      $region39: #{tpu_custom_call.1} parent=11 // pred_region
        _
      $region40: #{tpu_custom_call.1} parent=11 // pred_fallthru
        _
      // Predicated region
      $region41: #{tpu_custom_call.1} parent=11 // pred_check
        %p359 = pneg %p213
      $region42: #{tpu_custom_call.1} parent=11 // pred_check_branch
        %361 = sbr.rel (%p359) target = $region44
      $region43: #{tpu_custom_call.1} parent=11 // pred_region
        _
      $region44: #{tpu_custom_call.1} parent=11 // pred_fallthru
        _
      // Predicated region
      $region45: #{tpu_custom_call.1} parent=11 // pred_check
        %p362 = pneg %p234
      $region46: #{tpu_custom_call.1} parent=11 // pred_check_branch
        %364 = sbr.rel (%p362) target = $region48
      $region47: #{tpu_custom_call.1} parent=11 // pred_region
        _
      $region48: #{tpu_custom_call.1} parent=11 // pred_fallthru
        _
      // Predicated region
      $region49: #{tpu_custom_call.1} parent=11 // pred_check
        %p365 = pneg %p255
      $region50: #{tpu_custom_call.1} parent=11 // pred_check_branch
        %367 = sbr.rel (%p365) target = $region52
      $region51: #{tpu_custom_call.1} parent=11 // pred_region
        _
      $region52: #{tpu_custom_call.1} parent=11 // pred_fallthru
        _
      // Predicated region
      $region53: #{tpu_custom_call.1} parent=11 // pred_check
        %p368 = pneg %p276
      $region54: #{tpu_custom_call.1} parent=11 // pred_check_branch
        %370 = sbr.rel (%p368) target = $region56
      $region55: #{tpu_custom_call.1} parent=11 // pred_region
        _
      $region56: #{tpu_custom_call.1} parent=11 // pred_fallthru
        _
      // Predicated region
      $region57: #{tpu_custom_call.1} parent=11 // pred_check
        %p371 = pneg %p297
      $region58: #{tpu_custom_call.1} parent=11 // pred_check_branch
        %373 = sbr.rel (%p371) target = $region60
      $region59: #{tpu_custom_call.1} parent=11 // pred_region
        _
      $region60: #{tpu_custom_call.1} parent=11 // pred_fallthru
        _
    $region12: #{tpu_custom_call.1} parent=5 // pred_fallthru
      _
    %p374 = scmp.lt.s32.totalorder %s19, 3
    // Predicated region
    $region61: #{tpu_custom_call.1} parent=5 // pred_check
      %p375 = pneg %p374
    $region62: #{tpu_custom_call.1} parent=5 // pred_check_branch
      %377 = sbr.rel (%p375) target = $region64
    $region63: #{tpu_custom_call.1} parent=5 // pred_region
      // Predicated region
      $region65: #{tpu_custom_call.1} parent=63 // pred_check
        %p378 = pneg %p39
      $region66: #{tpu_custom_call.1} parent=63 // pred_check_branch
        %380 = sbr.rel (%p378) target = $region68
      $region67: #{tpu_custom_call.1} parent=63 // pred_region
        %p381 = scmp.lt.s32.totalorder %s19, 2
        %s382 = scalar_select %p381, %s19, 2
        %s383 = smul.addr %s382, 32
        %s384 = smul.addr %s383, 8
        %s385 = scalar_lea.vmem %s0, %s384
      $region68: #{tpu_custom_call.1} parent=63 // pred_fallthru
        _
    $region64: #{tpu_custom_call.1} parent=5 // pred_fallthru
      _
    %p386 = scmp.le.s32.totalorder 1, %s19
    %p387 = scmp.lt.s32.totalorder %s19, 4
    %p388 = pnand %p386, %p387
    %p389 = pneg %p388
    // Predicated region
    $region69: #{tpu_custom_call.1} parent=5 // pred_check
      _
    $region70: #{tpu_custom_call.1} parent=5 // pred_check_branch
      %391 = sbr.rel (%p388) target = $region72
    $region71: #{tpu_custom_call.1} parent=5 // pred_region
      %s392 = ssub.s32 %s19, 1
      %p393 = scmp.lt.s32.totalorder %s24, 2
      %s394 = scalar_select %p393, %s24, 2
      %s395 = smul.addr %s394, 32
      %s396 = smul.addr %s395, 8
      %s397 = scalar_lea.vmem %s0, %s396
      %p398 = pneg %p45
      %p399 = pneg %p42
      %p400 = pneg %p66
      %p401 = pneg %p63
      %p402 = pneg %p87
      %p403 = pneg %p84
      %p404 = pneg %p108
      %p405 = pneg %p105
      %p406 = pneg %p129
      %p407 = pneg %p126
      %p408 = pneg %p150
      %p409 = pneg %p147
      %p410 = pneg %p171
      %p411 = pneg %p168
      %p412 = pneg %p192
      %p413 = pneg %p189
      %p414 = pneg %p213
      %p415 = pneg %p210
      %p416 = pneg %p234
      %p417 = pneg %p231
      %p418 = pneg %p255
      %p419 = pneg %p252
      %p420 = pneg %p276
      %p421 = pneg %p273
      %p422 = pneg %p297
      %p423 = pneg %p294
      %p424 = pneg %p323
      %p425 = pneg %p320
      %p426 = scmp.lt.s32.totalorder %s24, 2
      %s427 = scalar_select %p426, %s24, 2
      %s428 = smul.addr %s427, 32
      %s429 = smul.addr %s428, 8
      %s430 = scalar_lea.vmem %s13, %s429
      %p431 = scmp.lt.s32.totalorder %s24, 2
      %s432 = scalar_select %p431, %s24, 2
      %s433 = smul.addr %s432, 32
      %s434 = smul.addr %s433, 8
      %s435 = scalar_lea.vmem %s0, %s434
      %p436 = scmp.lt.s32.totalorder %s24, 2
      %s437 = scalar_select %p436, %s24, 2
      %s438 = smul.addr %s437, 32
      %s439 = smul.addr %s438, 8
      %s440 = scalar_lea.vmem %s13, %s439
      %v442 = vld [vmem:[%s435] sm:$0xff]
      %v443 = vld [vmem:[%s435 + $0x8] sm:$0xff]
      %v444 = vld [vmem:[%s435 + $0x10] sm:$0xff]
      %v445 = vld [vmem:[%s435 + $0x18] sm:$0xff]
      %v446 = vld [vmem:[%s435 + $0x20] sm:$0xff]
      %v447 = vld [vmem:[%s435 + $0x28] sm:$0xff]
      %v448 = vld [vmem:[%s435 + $0x30] sm:$0xff]
      %v449 = vld [vmem:[%s435 + $0x38] sm:$0xff]
      %v450 = vld [vmem:[%s435 + $0x40] sm:$0xff]
      %v451 = vld [vmem:[%s435 + $0x48] sm:$0xff]
      %v452 = vld [vmem:[%s435 + $0x50] sm:$0xff]
      %v453 = vld [vmem:[%s435 + $0x58] sm:$0xff]
      %v454 = vld [vmem:[%s435 + $0x60] sm:$0xff]
      %v455 = vld [vmem:[%s435 + $0x68] sm:$0xff]
      %v456 = vld [vmem:[%s435 + $0x70] sm:$0xff]
      %v457 = vld [vmem:[%s435 + $0x78] sm:$0xff]
      %v458 = vld [vmem:[%s435 + $0x80] sm:$0xff]
      %v459 = vld [vmem:[%s435 + $0x88] sm:$0xff]
      %v460 = vld [vmem:[%s435 + $0x90] sm:$0xff]
      %v461 = vld [vmem:[%s435 + $0x98] sm:$0xff]
      %v462 = vld [vmem:[%s435 + $0xa0] sm:$0xff]
      %v463 = vld [vmem:[%s435 + $0xa8] sm:$0xff]
      %v464 = vld [vmem:[%s435 + $0xb0] sm:$0xff]
      %v465 = vld [vmem:[%s435 + $0xb8] sm:$0xff]
      %v466 = vld [vmem:[%s435 + $0xc0] sm:$0xff]
      %v467 = vld [vmem:[%s435 + $0xc8] sm:$0xff]
      %v468 = vld [vmem:[%s435 + $0xd0] sm:$0xff]
      %v469 = vld [vmem:[%s435 + $0xd8] sm:$0xff]
      %v470 = vld [vmem:[%s435 + $0xe0] sm:$0xff]
      %v471 = vld [vmem:[%s435 + $0xe8] sm:$0xff]
      %v472 = vld [vmem:[%s435 + $0xf0] sm:$0xff]
      %v473 = vld [vmem:[%s435 + $0xf8] sm:$0xff]
      %v474 = vld [vmem:[%s1] sm:$0xff]
      %v475 = vld [vmem:[%s1 + $0x8] sm:$0xff]
      %v476 = vld [vmem:[%s1 + $0x10] sm:$0xff]
      %v477 = vld [vmem:[%s1 + $0x18] sm:$0xff]
      %v478 = vld [vmem:[%s1 + $0x20] sm:$0xff]
      %v479 = vld [vmem:[%s1 + $0x28] sm:$0xff]
      %v480 = vld [vmem:[%s1 + $0x30] sm:$0xff]
      %v481 = vld [vmem:[%s1 + $0x38] sm:$0xff]
      %v482 = vld [vmem:[%s1 + $0x40] sm:$0xff]
      %v483 = vld [vmem:[%s1 + $0x48] sm:$0xff]
      %v484 = vld [vmem:[%s1 + $0x50] sm:$0xff]
      %v485 = vld [vmem:[%s1 + $0x58] sm:$0xff]
      %v486 = vld [vmem:[%s1 + $0x60] sm:$0xff]
      %v487 = vld [vmem:[%s1 + $0x68] sm:$0xff]
      %v488 = vld [vmem:[%s1 + $0x70] sm:$0xff]
      %v489 = vld [vmem:[%s1 + $0x78] sm:$0xff]
      %v490 = vld [vmem:[%s1 + $0x80] sm:$0xff]
      %v491 = vld [vmem:[%s1 + $0x88] sm:$0xff]
      %v492 = vld [vmem:[%s1 + $0x90] sm:$0xff]
      %v493 = vld [vmem:[%s1 + $0x98] sm:$0xff]
      %v494 = vld [vmem:[%s1 + $0xa0] sm:$0xff]
      %v495 = vld [vmem:[%s1 + $0xa8] sm:$0xff]
      %v496 = vld [vmem:[%s1 + $0xb0] sm:$0xff]
      %v497 = vld [vmem:[%s1 + $0xb8] sm:$0xff]
      %v498 = vld [vmem:[%s1 + $0xc0] sm:$0xff]
      %v499 = vld [vmem:[%s1 + $0xc8] sm:$0xff]
      %v500 = vld [vmem:[%s1 + $0xd0] sm:$0xff]
      %v501 = vld [vmem:[%s1 + $0xd8] sm:$0xff]
      %v502 = vld [vmem:[%s1 + $0xe0] sm:$0xff]
      %v503 = vld [vmem:[%s1 + $0xe8] sm:$0xff]
      %v504 = vld [vmem:[%s1 + $0xf0] sm:$0xff]
      %v505 = vld [vmem:[%s1 + $0xf8] sm:$0xff]
      %v506 = vrot.slane %v442, 7
      %v507 = vrot.slane %v443, 7
      %v508 = vrot.slane %v444, 7
      %v509 = vrot.slane %v445, 7
      %v510 = vrot.slane %v446, 7
      %v511 = vrot.slane %v447, 7
      %v512 = vrot.slane %v448, 7
      %v513 = vrot.slane %v449, 7
      %v514 = vrot.slane %v450, 7
      %v515 = vrot.slane %v451, 7
      %v516 = vrot.slane %v452, 7
      %v517 = vrot.slane %v453, 7
      %v518 = vrot.slane %v454, 7
      %v519 = vrot.slane %v455, 7
      %v520 = vrot.slane %v456, 7
      %v521 = vrot.slane %v457, 7
      %v522 = vrot.slane %v458, 7
      %v523 = vrot.slane %v459, 7
      %v524 = vrot.slane %v460, 7
      %v525 = vrot.slane %v461, 7
      %v526 = vrot.slane %v462, 7
      %v527 = vrot.slane %v463, 7
      %v528 = vrot.slane %v464, 7
      %v529 = vrot.slane %v465, 7
      %v530 = vrot.slane %v466, 7
      %v531 = vrot.slane %v467, 7
      %v532 = vrot.slane %v468, 7
      %v533 = vrot.slane %v469, 7
      %v534 = vrot.slane %v470, 7
      %v535 = vrot.slane %v471, 7
      %v536 = vrot.slane %v472, 7
      %v537 = vrot.slane %v473, 7
      %v538 = vlaneseq
      %v539 = vshrl.u32 %v538, 7
      %vm540 = vcmp.lt.s32.totalorder %v539, 1
      %v541 = vsel %vm540, %v536, %v537
      %v542 = vsel %vm540, %v535, %v536
      %v543 = vsel %vm540, %v534, %v535
      %v544 = vsel %vm540, %v533, %v534
      %v545 = vsel %vm540, %v532, %v533
      %v546 = vsel %vm540, %v531, %v532
      %v547 = vsel %vm540, %v530, %v531
      %v548 = vsel %vm540, %v529, %v530
      %v549 = vsel %vm540, %v528, %v529
      %v550 = vsel %vm540, %v527, %v528
      %v551 = vsel %vm540, %v526, %v527
      %v552 = vsel %vm540, %v525, %v526
      %v553 = vsel %vm540, %v524, %v525
      %v554 = vsel %vm540, %v523, %v524
      %v555 = vsel %vm540, %v522, %v523
      %v556 = vsel %vm540, %v521, %v522
      %v557 = vsel %vm540, %v520, %v521
      %v558 = vsel %vm540, %v519, %v520
      %v559 = vsel %vm540, %v518, %v519
      %v560 = vsel %vm540, %v517, %v518
      %v561 = vsel %vm540, %v516, %v517
      %v562 = vsel %vm540, %v515, %v516
      %v563 = vsel %vm540, %v514, %v515
      %v564 = vsel %vm540, %v513, %v514
      %v565 = vsel %vm540, %v512, %v513
      %v566 = vsel %vm540, %v511, %v512
      %v567 = vsel %vm540, %v510, %v511
      %v568 = vsel %vm540, %v509, %v510
      %v569 = vsel %vm540, %v508, %v509
      %v570 = vsel %vm540, %v507, %v508
      %v571 = vsel %vm540, %v506, %v507
      %v572 = vsel %vm540, %v537, %v506
      %574 = vset.pattern.permute.xlu0 0
      %575 = vperm.xlu0 %574, %v474
      %v576 = vpop.permute.xlu0 %575
      %579 = vset.pattern.permute.xlu0 0
      %580 = vperm.xlu0 %579, %v475
      %v581 = vpop.permute.xlu0 %580
      %584 = vset.pattern.permute.xlu0 0
      %585 = vperm.xlu0 %584, %v476
      %v586 = vpop.permute.xlu0 %585
      %589 = vset.pattern.permute.xlu0 0
      %590 = vperm.xlu0 %589, %v477
      %v591 = vpop.permute.xlu0 %590
      %594 = vset.pattern.permute.xlu0 0
      %595 = vperm.xlu0 %594, %v478
      %v596 = vpop.permute.xlu0 %595
      %599 = vset.pattern.permute.xlu0 0
      %600 = vperm.xlu0 %599, %v479
      %v601 = vpop.permute.xlu0 %600
      %604 = vset.pattern.permute.xlu0 0
      %605 = vperm.xlu0 %604, %v480
      %v606 = vpop.permute.xlu0 %605
      %609 = vset.pattern.permute.xlu0 0
      %610 = vperm.xlu0 %609, %v481
      %v611 = vpop.permute.xlu0 %610
      %614 = vset.pattern.permute.xlu0 0
      %615 = vperm.xlu0 %614, %v482
      %v616 = vpop.permute.xlu0 %615
      %619 = vset.pattern.permute.xlu0 0
      %620 = vperm.xlu0 %619, %v483
      %v621 = vpop.permute.xlu0 %620
      %624 = vset.pattern.permute.xlu0 0
      %625 = vperm.xlu0 %624, %v484
      %v626 = vpop.permute.xlu0 %625
      %629 = vset.pattern.permute.xlu0 0
      %630 = vperm.xlu0 %629, %v485
      %v631 = vpop.permute.xlu0 %630
      %634 = vset.pattern.permute.xlu0 0
      %635 = vperm.xlu0 %634, %v486
      %v636 = vpop.permute.xlu0 %635
      %639 = vset.pattern.permute.xlu0 0
      %640 = vperm.xlu0 %639, %v487
      %v641 = vpop.permute.xlu0 %640
      %644 = vset.pattern.permute.xlu0 0
      %645 = vperm.xlu0 %644, %v488
      %v646 = vpop.permute.xlu0 %645
      %649 = vset.pattern.permute.xlu0 0
      %650 = vperm.xlu0 %649, %v489
      %v651 = vpop.permute.xlu0 %650
      %654 = vset.pattern.permute.xlu0 0
      %655 = vperm.xlu0 %654, %v490
      %v656 = vpop.permute.xlu0 %655
      %659 = vset.pattern.permute.xlu0 0
      %660 = vperm.xlu0 %659, %v491
      %v661 = vpop.permute.xlu0 %660
      %664 = vset.pattern.permute.xlu0 0
      %665 = vperm.xlu0 %664, %v492
      %v666 = vpop.permute.xlu0 %665
      %669 = vset.pattern.permute.xlu0 0
      %670 = vperm.xlu0 %669, %v493
      %v671 = vpop.permute.xlu0 %670
      %674 = vset.pattern.permute.xlu0 0
      %675 = vperm.xlu0 %674, %v494
      %v676 = vpop.permute.xlu0 %675
      %679 = vset.pattern.permute.xlu0 0
      %680 = vperm.xlu0 %679, %v495
      %v681 = vpop.permute.xlu0 %680
      %684 = vset.pattern.permute.xlu0 0
      %685 = vperm.xlu0 %684, %v496
      %v686 = vpop.permute.xlu0 %685
      %689 = vset.pattern.permute.xlu0 0
      %690 = vperm.xlu0 %689, %v497
      %v691 = vpop.permute.xlu0 %690
      %694 = vset.pattern.permute.xlu0 0
      %695 = vperm.xlu0 %694, %v498
      %v696 = vpop.permute.xlu0 %695
      %699 = vset.pattern.permute.xlu0 0
      %700 = vperm.xlu0 %699, %v499
      %v701 = vpop.permute.xlu0 %700
      %704 = vset.pattern.permute.xlu0 0
      %705 = vperm.xlu0 %704, %v500
      %v706 = vpop.permute.xlu0 %705
      %709 = vset.pattern.permute.xlu0 0
      %710 = vperm.xlu0 %709, %v501
      %v711 = vpop.permute.xlu0 %710
      %714 = vset.pattern.permute.xlu0 0
      %715 = vperm.xlu0 %714, %v502
      %v716 = vpop.permute.xlu0 %715
      %719 = vset.pattern.permute.xlu0 0
      %720 = vperm.xlu0 %719, %v503
      %v721 = vpop.permute.xlu0 %720
      %724 = vset.pattern.permute.xlu0 0
      %725 = vperm.xlu0 %724, %v504
      %v726 = vpop.permute.xlu0 %725
      %729 = vset.pattern.permute.xlu0 0
      %730 = vperm.xlu0 %729, %v505
      %v731 = vpop.permute.xlu0 %730
      %v733 = vmul.f32 %v576, %v572
      %v734 = vmul.f32 %v581, %v571
      %v735 = vmul.f32 %v586, %v570
      %v736 = vmul.f32 %v591, %v569
      %v737 = vmul.f32 %v596, %v568
      %v738 = vmul.f32 %v601, %v567
      %v739 = vmul.f32 %v606, %v566
      %v740 = vmul.f32 %v611, %v565
      %v741 = vmul.f32 %v616, %v564
      %v742 = vmul.f32 %v621, %v563
      %v743 = vmul.f32 %v626, %v562
      %v744 = vmul.f32 %v631, %v561
      %v745 = vmul.f32 %v636, %v560
      %v746 = vmul.f32 %v641, %v559
      %v747 = vmul.f32 %v646, %v558
      %v748 = vmul.f32 %v651, %v557
      %v749 = vmul.f32 %v656, %v556
      %v750 = vmul.f32 %v661, %v555
      %v751 = vmul.f32 %v666, %v554
      %v752 = vmul.f32 %v671, %v553
      %v753 = vmul.f32 %v676, %v552
      %v754 = vmul.f32 %v681, %v551
      %v755 = vmul.f32 %v686, %v550
      %v756 = vmul.f32 %v691, %v549
      %v757 = vmul.f32 %v696, %v548
      %v758 = vmul.f32 %v701, %v547
      %v759 = vmul.f32 %v706, %v546
      %v760 = vmul.f32 %v711, %v545
      %v761 = vmul.f32 %v716, %v544
      %v762 = vmul.f32 %v721, %v543
      %v763 = vmul.f32 %v726, %v542
      %v764 = vmul.f32 %v731, %v541
      %v765 = vld [vmem:[%s2] sm:$0xff]
      %v766 = vld [vmem:[%s2 + $0x8] sm:$0xff]
      %v767 = vld [vmem:[%s2 + $0x10] sm:$0xff]
      %v768 = vld [vmem:[%s2 + $0x18] sm:$0xff]
      %v769 = vld [vmem:[%s2 + $0x20] sm:$0xff]
      %v770 = vld [vmem:[%s2 + $0x28] sm:$0xff]
      %v771 = vld [vmem:[%s2 + $0x30] sm:$0xff]
      %v772 = vld [vmem:[%s2 + $0x38] sm:$0xff]
      %v773 = vld [vmem:[%s2 + $0x40] sm:$0xff]
      %v774 = vld [vmem:[%s2 + $0x48] sm:$0xff]
      %v775 = vld [vmem:[%s2 + $0x50] sm:$0xff]
      %v776 = vld [vmem:[%s2 + $0x58] sm:$0xff]
      %v777 = vld [vmem:[%s2 + $0x60] sm:$0xff]
      %v778 = vld [vmem:[%s2 + $0x68] sm:$0xff]
      %v779 = vld [vmem:[%s2 + $0x70] sm:$0xff]
      %v780 = vld [vmem:[%s2 + $0x78] sm:$0xff]
      %v781 = vld [vmem:[%s2 + $0x80] sm:$0xff]
      %v782 = vld [vmem:[%s2 + $0x88] sm:$0xff]
      %v783 = vld [vmem:[%s2 + $0x90] sm:$0xff]
      %v784 = vld [vmem:[%s2 + $0x98] sm:$0xff]
      %v785 = vld [vmem:[%s2 + $0xa0] sm:$0xff]
      %v786 = vld [vmem:[%s2 + $0xa8] sm:$0xff]
      %v787 = vld [vmem:[%s2 + $0xb0] sm:$0xff]
      %v788 = vld [vmem:[%s2 + $0xb8] sm:$0xff]
      %v789 = vld [vmem:[%s2 + $0xc0] sm:$0xff]
      %v790 = vld [vmem:[%s2 + $0xc8] sm:$0xff]
      %v791 = vld [vmem:[%s2 + $0xd0] sm:$0xff]
      %v792 = vld [vmem:[%s2 + $0xd8] sm:$0xff]
      %v793 = vld [vmem:[%s2 + $0xe0] sm:$0xff]
      %v794 = vld [vmem:[%s2 + $0xe8] sm:$0xff]
      %v795 = vld [vmem:[%s2 + $0xf0] sm:$0xff]
      %v796 = vld [vmem:[%s2 + $0xf8] sm:$0xff]
      %v797 = vrot.slane %v442, 1
      %v798 = vrot.slane %v443, 1
      %v799 = vrot.slane %v444, 1
      %v800 = vrot.slane %v445, 1
      %v801 = vrot.slane %v446, 1
      %v802 = vrot.slane %v447, 1
      %v803 = vrot.slane %v448, 1
      %v804 = vrot.slane %v449, 1
      %v805 = vrot.slane %v450, 1
      %v806 = vrot.slane %v451, 1
      %v807 = vrot.slane %v452, 1
      %v808 = vrot.slane %v453, 1
      %v809 = vrot.slane %v454, 1
      %v810 = vrot.slane %v455, 1
      %v811 = vrot.slane %v456, 1
      %v812 = vrot.slane %v457, 1
      %v813 = vrot.slane %v458, 1
      %v814 = vrot.slane %v459, 1
      %v815 = vrot.slane %v460, 1
      %v816 = vrot.slane %v461, 1
      %v817 = vrot.slane %v462, 1
      %v818 = vrot.slane %v463, 1
      %v819 = vrot.slane %v464, 1
      %v820 = vrot.slane %v465, 1
      %v821 = vrot.slane %v466, 1
      %v822 = vrot.slane %v467, 1
      %v823 = vrot.slane %v468, 1
      %v824 = vrot.slane %v469, 1
      %v825 = vrot.slane %v470, 1
      %v826 = vrot.slane %v471, 1
      %v827 = vrot.slane %v472, 1
      %v828 = vrot.slane %v473, 1
      %vm829 = vcmp.lt.s32.totalorder %v539, 7
      %v830 = vsel %vm829, %v827, %v828
      %v831 = vsel %vm829, %v826, %v827
      %v832 = vsel %vm829, %v825, %v826
      %v833 = vsel %vm829, %v824, %v825
      %v834 = vsel %vm829, %v823, %v824
      %v835 = vsel %vm829, %v822, %v823
      %v836 = vsel %vm829, %v821, %v822
      %v837 = vsel %vm829, %v820, %v821
      %v838 = vsel %vm829, %v819, %v820
      %v839 = vsel %vm829, %v818, %v819
      %v840 = vsel %vm829, %v817, %v818
      %v841 = vsel %vm829, %v816, %v817
      %v842 = vsel %vm829, %v815, %v816
      %v843 = vsel %vm829, %v814, %v815
      %v844 = vsel %vm829, %v813, %v814
      %v845 = vsel %vm829, %v812, %v813
      %v846 = vsel %vm829, %v811, %v812
      %v847 = vsel %vm829, %v810, %v811
      %v848 = vsel %vm829, %v809, %v810
      %v849 = vsel %vm829, %v808, %v809
      %v850 = vsel %vm829, %v807, %v808
      %v851 = vsel %vm829, %v806, %v807
      %v852 = vsel %vm829, %v805, %v806
      %v853 = vsel %vm829, %v804, %v805
      %v854 = vsel %vm829, %v803, %v804
      %v855 = vsel %vm829, %v802, %v803
      %v856 = vsel %vm829, %v801, %v802
      %v857 = vsel %vm829, %v800, %v801
      %v858 = vsel %vm829, %v799, %v800
      %v859 = vsel %vm829, %v798, %v799
      %v860 = vsel %vm829, %v797, %v798
      %v861 = vsel %vm829, %v828, %v797
      %863 = vset.pattern.permute.xlu0 0
      %864 = vperm.xlu0 %863, %v765
      %v865 = vpop.permute.xlu0 %864
      %868 = vset.pattern.permute.xlu0 0
      %869 = vperm.xlu0 %868, %v766
      %v870 = vpop.permute.xlu0 %869
      %873 = vset.pattern.permute.xlu0 0
      %874 = vperm.xlu0 %873, %v767
      %v875 = vpop.permute.xlu0 %874
      %878 = vset.pattern.permute.xlu0 0
      %879 = vperm.xlu0 %878, %v768
      %v880 = vpop.permute.xlu0 %879
      %883 = vset.pattern.permute.xlu0 0
      %884 = vperm.xlu0 %883, %v769
      %v885 = vpop.permute.xlu0 %884
      %888 = vset.pattern.permute.xlu0 0
      %889 = vperm.xlu0 %888, %v770
      %v890 = vpop.permute.xlu0 %889
      %893 = vset.pattern.permute.xlu0 0
      %894 = vperm.xlu0 %893, %v771
      %v895 = vpop.permute.xlu0 %894
      %898 = vset.pattern.permute.xlu0 0
      %899 = vperm.xlu0 %898, %v772
      %v900 = vpop.permute.xlu0 %899
      %903 = vset.pattern.permute.xlu0 0
      %904 = vperm.xlu0 %903, %v773
      %v905 = vpop.permute.xlu0 %904
      %908 = vset.pattern.permute.xlu0 0
      %909 = vperm.xlu0 %908, %v774
      %v910 = vpop.permute.xlu0 %909
      %913 = vset.pattern.permute.xlu0 0
      %914 = vperm.xlu0 %913, %v775
      %v915 = vpop.permute.xlu0 %914
      %918 = vset.pattern.permute.xlu0 0
      %919 = vperm.xlu0 %918, %v776
      %v920 = vpop.permute.xlu0 %919
      %923 = vset.pattern.permute.xlu0 0
      %924 = vperm.xlu0 %923, %v777
      %v925 = vpop.permute.xlu0 %924
      %928 = vset.pattern.permute.xlu0 0
      %929 = vperm.xlu0 %928, %v778
      %v930 = vpop.permute.xlu0 %929
      %933 = vset.pattern.permute.xlu0 0
      %934 = vperm.xlu0 %933, %v779
      %v935 = vpop.permute.xlu0 %934
      %938 = vset.pattern.permute.xlu0 0
      %939 = vperm.xlu0 %938, %v780
      %v940 = vpop.permute.xlu0 %939
      %943 = vset.pattern.permute.xlu0 0
      %944 = vperm.xlu0 %943, %v781
      %v945 = vpop.permute.xlu0 %944
      %948 = vset.pattern.permute.xlu0 0
      %949 = vperm.xlu0 %948, %v782
      %v950 = vpop.permute.xlu0 %949
      %953 = vset.pattern.permute.xlu0 0
      %954 = vperm.xlu0 %953, %v783
      %v955 = vpop.permute.xlu0 %954
      %958 = vset.pattern.permute.xlu0 0
      %959 = vperm.xlu0 %958, %v784
      %v960 = vpop.permute.xlu0 %959
      %963 = vset.pattern.permute.xlu0 0
      %964 = vperm.xlu0 %963, %v785
      %v965 = vpop.permute.xlu0 %964
      %968 = vset.pattern.permute.xlu0 0
      %969 = vperm.xlu0 %968, %v786
      %v970 = vpop.permute.xlu0 %969
      %973 = vset.pattern.permute.xlu0 0
      %974 = vperm.xlu0 %973, %v787
      %v975 = vpop.permute.xlu0 %974
      %978 = vset.pattern.permute.xlu0 0
      %979 = vperm.xlu0 %978, %v788
      %v980 = vpop.permute.xlu0 %979
      %983 = vset.pattern.permute.xlu0 0
      %984 = vperm.xlu0 %983, %v789
      %v985 = vpop.permute.xlu0 %984
      %988 = vset.pattern.permute.xlu0 0
      %989 = vperm.xlu0 %988, %v790
      %v990 = vpop.permute.xlu0 %989
      %993 = vset.pattern.permute.xlu0 0
      %994 = vperm.xlu0 %993, %v791
      %v995 = vpop.permute.xlu0 %994
      %998 = vset.pattern.permute.xlu0 0
      %999 = vperm.xlu0 %998, %v792
      %v1000 = vpop.permute.xlu0 %999
      %1003 = vset.pattern.permute.xlu0 0
      %1004 = vperm.xlu0 %1003, %v793
      %v1005 = vpop.permute.xlu0 %1004
      %1008 = vset.pattern.permute.xlu0 0
      %1009 = vperm.xlu0 %1008, %v794
      %v1010 = vpop.permute.xlu0 %1009
      %1013 = vset.pattern.permute.xlu0 0
      %1014 = vperm.xlu0 %1013, %v795
      %v1015 = vpop.permute.xlu0 %1014
      %1018 = vset.pattern.permute.xlu0 0
      %1019 = vperm.xlu0 %1018, %v796
      %v1020 = vpop.permute.xlu0 %1019
      %v1022 = vmul.f32 %v865, %v860
      %v1023 = vmul.f32 %v870, %v859
      %v1024 = vmul.f32 %v875, %v858
      %v1025 = vmul.f32 %v880, %v857
      %v1026 = vmul.f32 %v885, %v856
      %v1027 = vmul.f32 %v890, %v855
      %v1028 = vmul.f32 %v895, %v854
      %v1029 = vmul.f32 %v900, %v853
      %v1030 = vmul.f32 %v905, %v852
      %v1031 = vmul.f32 %v910, %v851
      %v1032 = vmul.f32 %v915, %v850
      %v1033 = vmul.f32 %v920, %v849
      %v1034 = vmul.f32 %v925, %v848
      %v1035 = vmul.f32 %v930, %v847
      %v1036 = vmul.f32 %v935, %v846
      %v1037 = vmul.f32 %v940, %v845
      %v1038 = vmul.f32 %v945, %v844
      %v1039 = vmul.f32 %v950, %v843
      %v1040 = vmul.f32 %v955, %v842
      %v1041 = vmul.f32 %v960, %v841
      %v1042 = vmul.f32 %v965, %v840
      %v1043 = vmul.f32 %v970, %v839
      %v1044 = vmul.f32 %v975, %v838
      %v1045 = vmul.f32 %v980, %v837
      %v1046 = vmul.f32 %v985, %v836
      %v1047 = vmul.f32 %v990, %v835
      %v1048 = vmul.f32 %v995, %v834
      %v1049 = vmul.f32 %v1000, %v833
      %v1050 = vmul.f32 %v1005, %v832
      %v1051 = vmul.f32 %v1010, %v831
      %v1052 = vmul.f32 %v1015, %v830
      %v1053 = vmul.f32 %v1020, %v861
      %v1054 = vld [vmem:[%s3] sm:$0x1]
      %v1055 = vperm.slane %v1054, 0
      %v1056 = vmul.f32 %v1055, 0.0
      %v1057 = vmul.f32 %v733, %v1055
      %v1058 = vmul.f32 %v734, %v1055
      %v1059 = vmul.f32 %v735, %v1055
      %v1060 = vmul.f32 %v736, %v1055
      %v1061 = vmul.f32 %v737, %v1055
      %v1062 = vmul.f32 %v738, %v1055
      %v1063 = vmul.f32 %v739, %v1055
      %v1064 = vmul.f32 %v740, %v1055
      %v1065 = vmul.f32 %v741, %v1055
      %v1066 = vmul.f32 %v742, %v1055
      %v1067 = vmul.f32 %v743, %v1055
      %v1068 = vmul.f32 %v744, %v1055
      %v1069 = vmul.f32 %v745, %v1055
      %v1070 = vmul.f32 %v746, %v1055
      %v1071 = vmul.f32 %v747, %v1055
      %v1072 = vmul.f32 %v748, %v1055
      %v1073 = vmul.f32 %v749, %v1055
      %v1074 = vmul.f32 %v750, %v1055
      %v1075 = vmul.f32 %v751, %v1055
      %v1076 = vmul.f32 %v752, %v1055
      %v1077 = vmul.f32 %v753, %v1055
      %v1078 = vmul.f32 %v754, %v1055
      %v1079 = vmul.f32 %v755, %v1055
      %v1080 = vmul.f32 %v756, %v1055
      %v1081 = vmul.f32 %v757, %v1055
      %v1082 = vmul.f32 %v758, %v1055
      %v1083 = vmul.f32 %v759, %v1055
      %v1084 = vmul.f32 %v760, %v1055
      %v1085 = vmul.f32 %v761, %v1055
      %v1086 = vmul.f32 %v762, %v1055
      %v1087 = vadd.f32 %v1056, 0.0
      %v1088 = vadd.f32 %v1057, 0.0
      %v1089 = vadd.f32 %v1058, 0.0
      %v1090 = vadd.f32 %v1059, 0.0
      %v1091 = vadd.f32 %v1060, 0.0
      %v1092 = vadd.f32 %v1061, 0.0
      %v1093 = vadd.f32 %v1062, 0.0
      %v1094 = vadd.f32 %v1063, 0.0
      %v1095 = vadd.f32 %v1064, 0.0
      %v1096 = vadd.f32 %v1065, 0.0
      %v1097 = vadd.f32 %v1066, 0.0
      %v1098 = vadd.f32 %v1067, 0.0
      %v1099 = vadd.f32 %v1068, 0.0
      %v1100 = vadd.f32 %v1069, 0.0
      %v1101 = vadd.f32 %v1070, 0.0
      %v1102 = vadd.f32 %v1071, 0.0
      %v1103 = vadd.f32 %v1072, 0.0
      %v1104 = vadd.f32 %v1073, 0.0
      %v1105 = vadd.f32 %v1074, 0.0
      %v1106 = vadd.f32 %v1075, 0.0
      %v1107 = vadd.f32 %v1076, 0.0
      %v1108 = vadd.f32 %v1077, 0.0
      %v1109 = vadd.f32 %v1078, 0.0
      %v1110 = vadd.f32 %v1079, 0.0
      %v1111 = vadd.f32 %v1080, 0.0
      %v1112 = vadd.f32 %v1081, 0.0
      %v1113 = vadd.f32 %v1082, 0.0
      %v1114 = vadd.f32 %v1083, 0.0
      %v1115 = vadd.f32 %v1084, 0.0
      %v1116 = vadd.f32 %v1085, 0.0
      %v1117 = vadd.f32 %v1086, 0.0
      %s1118 = scalar_lea.vmem %s3, 4
      %v1119 = vld [vmem:[%s1118] sm:$0x1]
      %v1120 = vperm.slane %v1119, 0
      %v1121 = vmul.f32 %v733, %v1120
      %v1122 = vmul.f32 %v734, %v1120
      %v1123 = vmul.f32 %v735, %v1120
      %v1124 = vmul.f32 %v736, %v1120
      %v1125 = vmul.f32 %v737, %v1120
      %v1126 = vmul.f32 %v738, %v1120
      %v1127 = vmul.f32 %v739, %v1120
      %v1128 = vmul.f32 %v740, %v1120
      %v1129 = vmul.f32 %v741, %v1120
      %v1130 = vmul.f32 %v742, %v1120
      %v1131 = vmul.f32 %v743, %v1120
      %v1132 = vmul.f32 %v744, %v1120
      %v1133 = vmul.f32 %v745, %v1120
      %v1134 = vmul.f32 %v746, %v1120
      %v1135 = vmul.f32 %v747, %v1120
      %v1136 = vmul.f32 %v748, %v1120
      %v1137 = vmul.f32 %v749, %v1120
      %v1138 = vmul.f32 %v750, %v1120
      %v1139 = vmul.f32 %v751, %v1120
      %v1140 = vmul.f32 %v752, %v1120
      %v1141 = vmul.f32 %v753, %v1120
      %v1142 = vmul.f32 %v754, %v1120
      %v1143 = vmul.f32 %v755, %v1120
      %v1144 = vmul.f32 %v756, %v1120
      %v1145 = vmul.f32 %v757, %v1120
      %v1146 = vmul.f32 %v758, %v1120
      %v1147 = vmul.f32 %v759, %v1120
      %v1148 = vmul.f32 %v760, %v1120
      %v1149 = vmul.f32 %v761, %v1120
      %v1150 = vmul.f32 %v762, %v1120
      %v1151 = vmul.f32 %v763, %v1120
      %v1152 = vmul.f32 %v764, %v1120
      %v1153 = vadd.f32 %v1087, %v1121
      %v1154 = vadd.f32 %v1087, %v1122
      %v1155 = vadd.f32 %v1088, %v1123
      %v1156 = vadd.f32 %v1089, %v1124
      %v1157 = vadd.f32 %v1090, %v1125
      %v1158 = vadd.f32 %v1091, %v1126
      %v1159 = vadd.f32 %v1092, %v1127
      %v1160 = vadd.f32 %v1093, %v1128
      %v1161 = vadd.f32 %v1094, %v1129
      %v1162 = vadd.f32 %v1095, %v1130
      %v1163 = vadd.f32 %v1096, %v1131
      %v1164 = vadd.f32 %v1097, %v1132
      %v1165 = vadd.f32 %v1098, %v1133
      %v1166 = vadd.f32 %v1099, %v1134
      %v1167 = vadd.f32 %v1100, %v1135
      %v1168 = vadd.f32 %v1101, %v1136
      %v1169 = vadd.f32 %v1102, %v1137
      %v1170 = vadd.f32 %v1103, %v1138
      %v1171 = vadd.f32 %v1104, %v1139
      %v1172 = vadd.f32 %v1105, %v1140
      %v1173 = vadd.f32 %v1106, %v1141
      %v1174 = vadd.f32 %v1107, %v1142
      %v1175 = vadd.f32 %v1108, %v1143
      %v1176 = vadd.f32 %v1109, %v1144
      %v1177 = vadd.f32 %v1110, %v1145
      %v1178 = vadd.f32 %v1111, %v1146
      %v1179 = vadd.f32 %v1112, %v1147
      %v1180 = vadd.f32 %v1113, %v1148
      %v1181 = vadd.f32 %v1114, %v1149
      %v1182 = vadd.f32 %v1115, %v1150
      %v1183 = vadd.f32 %v1116, %v1151
      %v1184 = vadd.f32 %v1117, %v1152
      %s1185 = scalar_lea.vmem %s3, 8
      %v1186 = vld [vmem:[%s1185] sm:$0x1]
      %v1187 = vperm.slane %v1186, 0
      %v1188 = vmul.f32 %v735, %v1187
      %v1189 = vmul.f32 %v736, %v1187
      %v1190 = vmul.f32 %v737, %v1187
      %v1191 = vmul.f32 %v738, %v1187
      %v1192 = vmul.f32 %v739, %v1187
      %v1193 = vmul.f32 %v740, %v1187
      %v1194 = vmul.f32 %v741, %v1187
      %v1195 = vmul.f32 %v742, %v1187
      %v1196 = vmul.f32 %v743, %v1187
      %v1197 = vmul.f32 %v744, %v1187
      %v1198 = vmul.f32 %v745, %v1187
      %v1199 = vmul.f32 %v746, %v1187
      %v1200 = vmul.f32 %v747, %v1187
      %v1201 = vmul.f32 %v748, %v1187
      %v1202 = vmul.f32 %v749, %v1187
      %v1203 = vmul.f32 %v750, %v1187
      %v1204 = vmul.f32 %v751, %v1187
      %v1205 = vmul.f32 %v752, %v1187
      %v1206 = vmul.f32 %v753, %v1187
      %v1207 = vmul.f32 %v754, %v1187
      %v1208 = vmul.f32 %v755, %v1187
      %v1209 = vmul.f32 %v756, %v1187
      %v1210 = vmul.f32 %v757, %v1187
      %v1211 = vmul.f32 %v758, %v1187
      %v1212 = vmul.f32 %v759, %v1187
      %v1213 = vmul.f32 %v760, %v1187
      %v1214 = vmul.f32 %v761, %v1187
      %v1215 = vmul.f32 %v762, %v1187
      %v1216 = vmul.f32 %v763, %v1187
      %v1217 = vmul.f32 %v764, %v1187
      %v1218 = vmul.f32 %v1187, 0.0
      %v1219 = vadd.f32 %v1153, %v1188
      %v1220 = vadd.f32 %v1154, %v1189
      %v1221 = vadd.f32 %v1155, %v1190
      %v1222 = vadd.f32 %v1156, %v1191
      %v1223 = vadd.f32 %v1157, %v1192
      %v1224 = vadd.f32 %v1158, %v1193
      %v1225 = vadd.f32 %v1159, %v1194
      %v1226 = vadd.f32 %v1160, %v1195
      %v1227 = vadd.f32 %v1161, %v1196
      %v1228 = vadd.f32 %v1162, %v1197
      %v1229 = vadd.f32 %v1163, %v1198
      %v1230 = vadd.f32 %v1164, %v1199
      %v1231 = vadd.f32 %v1165, %v1200
      %v1232 = vadd.f32 %v1166, %v1201
      %v1233 = vadd.f32 %v1167, %v1202
      %v1234 = vadd.f32 %v1168, %v1203
      %v1235 = vadd.f32 %v1169, %v1204
      %v1236 = vadd.f32 %v1170, %v1205
      %v1237 = vadd.f32 %v1171, %v1206
      %v1238 = vadd.f32 %v1172, %v1207
      %v1239 = vadd.f32 %v1173, %v1208
      %v1240 = vadd.f32 %v1174, %v1209
      %v1241 = vadd.f32 %v1175, %v1210
      %v1242 = vadd.f32 %v1176, %v1211
      %v1243 = vadd.f32 %v1177, %v1212
      %v1244 = vadd.f32 %v1178, %v1213
      %v1245 = vadd.f32 %v1179, %v1214
      %v1246 = vadd.f32 %v1180, %v1215
      %v1247 = vadd.f32 %v1181, %v1216
      %v1248 = vadd.f32 %v1182, %v1217
      %v1249 = vadd.f32 %v1183, %v1218
      %v1250 = vadd.f32 %v1184, %v1218
      %v1251 = vld [vmem:[%s3 + $0x1] sm:$0x1]
      %v1252 = vperm.slane %v1251, 0
      %v1253 = vmul.f32 %v1252, 0.0
      %v1254 = vmul.f32 %v442, %v1252
      %v1255 = vmul.f32 %v443, %v1252
      %v1256 = vmul.f32 %v444, %v1252
      %v1257 = vmul.f32 %v445, %v1252
      %v1258 = vmul.f32 %v446, %v1252
      %v1259 = vmul.f32 %v447, %v1252
      %v1260 = vmul.f32 %v448, %v1252
      %v1261 = vmul.f32 %v449, %v1252
      %v1262 = vmul.f32 %v450, %v1252
      %v1263 = vmul.f32 %v451, %v1252
      %v1264 = vmul.f32 %v452, %v1252
      %v1265 = vmul.f32 %v453, %v1252
      %v1266 = vmul.f32 %v454, %v1252
      %v1267 = vmul.f32 %v455, %v1252
      %v1268 = vmul.f32 %v456, %v1252
      %v1269 = vmul.f32 %v457, %v1252
      %v1270 = vmul.f32 %v458, %v1252
      %v1271 = vmul.f32 %v459, %v1252
      %v1272 = vmul.f32 %v460, %v1252
      %v1273 = vmul.f32 %v461, %v1252
      %v1274 = vmul.f32 %v462, %v1252
      %v1275 = vmul.f32 %v463, %v1252
      %v1276 = vmul.f32 %v464, %v1252
      %v1277 = vmul.f32 %v465, %v1252
      %v1278 = vmul.f32 %v466, %v1252
      %v1279 = vmul.f32 %v467, %v1252
      %v1280 = vmul.f32 %v468, %v1252
      %v1281 = vmul.f32 %v469, %v1252
      %v1282 = vmul.f32 %v470, %v1252
      %v1283 = vmul.f32 %v471, %v1252
      %v1284 = vadd.f32 %v1219, %v1253
      %v1285 = vadd.f32 %v1220, %v1253
      %v1286 = vadd.f32 %v1221, %v1254
      %v1287 = vadd.f32 %v1222, %v1255
      %v1288 = vadd.f32 %v1223, %v1256
      %v1289 = vadd.f32 %v1224, %v1257
      %v1290 = vadd.f32 %v1225, %v1258
      %v1291 = vadd.f32 %v1226, %v1259
      %v1292 = vadd.f32 %v1227, %v1260
      %v1293 = vadd.f32 %v1228, %v1261
      %v1294 = vadd.f32 %v1229, %v1262
      %v1295 = vadd.f32 %v1230, %v1263
      %v1296 = vadd.f32 %v1231, %v1264
      %v1297 = vadd.f32 %v1232, %v1265
      %v1298 = vadd.f32 %v1233, %v1266
      %v1299 = vadd.f32 %v1234, %v1267
      %v1300 = vadd.f32 %v1235, %v1268
      %v1301 = vadd.f32 %v1236, %v1269
      %v1302 = vadd.f32 %v1237, %v1270
      %v1303 = vadd.f32 %v1238, %v1271
      %v1304 = vadd.f32 %v1239, %v1272
      %v1305 = vadd.f32 %v1240, %v1273
      %v1306 = vadd.f32 %v1241, %v1274
      %v1307 = vadd.f32 %v1242, %v1275
      %v1308 = vadd.f32 %v1243, %v1276
      %v1309 = vadd.f32 %v1244, %v1277
      %v1310 = vadd.f32 %v1245, %v1278
      %v1311 = vadd.f32 %v1246, %v1279
      %v1312 = vadd.f32 %v1247, %v1280
      %v1313 = vadd.f32 %v1248, %v1281
      %v1314 = vadd.f32 %v1249, %v1282
      %v1315 = vadd.f32 %v1250, %v1283
      %v1316 = vld [vmem:[%s1118 + $0x1] sm:$0x1]
      %v1317 = vperm.slane %v1316, 0
      %v1318 = vmul.f32 %v442, %v1317
      %v1319 = vmul.f32 %v443, %v1317
      %v1320 = vmul.f32 %v444, %v1317
      %v1321 = vmul.f32 %v445, %v1317
      %v1322 = vmul.f32 %v446, %v1317
      %v1323 = vmul.f32 %v447, %v1317
      %v1324 = vmul.f32 %v448, %v1317
      %v1325 = vmul.f32 %v449, %v1317
      %v1326 = vmul.f32 %v450, %v1317
      %v1327 = vmul.f32 %v451, %v1317
      %v1328 = vmul.f32 %v452, %v1317
      %v1329 = vmul.f32 %v453, %v1317
      %v1330 = vmul.f32 %v454, %v1317
      %v1331 = vmul.f32 %v455, %v1317
      %v1332 = vmul.f32 %v456, %v1317
      %v1333 = vmul.f32 %v457, %v1317
      %v1334 = vmul.f32 %v458, %v1317
      %v1335 = vmul.f32 %v459, %v1317
      %v1336 = vmul.f32 %v460, %v1317
      %v1337 = vmul.f32 %v461, %v1317
      %v1338 = vmul.f32 %v462, %v1317
      %v1339 = vmul.f32 %v463, %v1317
      %v1340 = vmul.f32 %v464, %v1317
      %v1341 = vmul.f32 %v465, %v1317
      %v1342 = vmul.f32 %v466, %v1317
      %v1343 = vmul.f32 %v467, %v1317
      %v1344 = vmul.f32 %v468, %v1317
      %v1345 = vmul.f32 %v469, %v1317
      %v1346 = vmul.f32 %v470, %v1317
      %v1347 = vmul.f32 %v471, %v1317
      %v1348 = vmul.f32 %v472, %v1317
      %v1349 = vmul.f32 %v473, %v1317
      %v1350 = vadd.f32 %v1284, %v1318
      %v1351 = vadd.f32 %v1285, %v1319
      %v1352 = vadd.f32 %v1286, %v1320
      %v1353 = vadd.f32 %v1287, %v1321
      %v1354 = vadd.f32 %v1288, %v1322
      %v1355 = vadd.f32 %v1289, %v1323
      %v1356 = vadd.f32 %v1290, %v1324
      %v1357 = vadd.f32 %v1291, %v1325
      %v1358 = vadd.f32 %v1292, %v1326
      %v1359 = vadd.f32 %v1293, %v1327
      %v1360 = vadd.f32 %v1294, %v1328
      %v1361 = vadd.f32 %v1295, %v1329
      %v1362 = vadd.f32 %v1296, %v1330
      %v1363 = vadd.f32 %v1297, %v1331
      %v1364 = vadd.f32 %v1298, %v1332
      %v1365 = vadd.f32 %v1299, %v1333
      %v1366 = vadd.f32 %v1300, %v1334
      %v1367 = vadd.f32 %v1301, %v1335
      %v1368 = vadd.f32 %v1302, %v1336
      %v1369 = vadd.f32 %v1303, %v1337
      %v1370 = vadd.f32 %v1304, %v1338
      %v1371 = vadd.f32 %v1305, %v1339
      %v1372 = vadd.f32 %v1306, %v1340
      %v1373 = vadd.f32 %v1307, %v1341
      %v1374 = vadd.f32 %v1308, %v1342
      %v1375 = vadd.f32 %v1309, %v1343
      %v1376 = vadd.f32 %v1310, %v1344
      %v1377 = vadd.f32 %v1311, %v1345
      %v1378 = vadd.f32 %v1312, %v1346
      %v1379 = vadd.f32 %v1313, %v1347
      %v1380 = vadd.f32 %v1314, %v1348
      %v1381 = vadd.f32 %v1315, %v1349
      %v1382 = vld [vmem:[%s1185 + $0x1] sm:$0x1]
      %v1383 = vperm.slane %v1382, 0
      %v1384 = vmul.f32 %v444, %v1383
      %v1385 = vmul.f32 %v445, %v1383
      %v1386 = vmul.f32 %v446, %v1383
      %v1387 = vmul.f32 %v447, %v1383
      %v1388 = vmul.f32 %v448, %v1383
      %v1389 = vmul.f32 %v449, %v1383
      %v1390 = vmul.f32 %v450, %v1383
      %v1391 = vmul.f32 %v451, %v1383
      %v1392 = vmul.f32 %v452, %v1383
      %v1393 = vmul.f32 %v453, %v1383
      %v1394 = vmul.f32 %v454, %v1383
      %v1395 = vmul.f32 %v455, %v1383
      %v1396 = vmul.f32 %v456, %v1383
      %v1397 = vmul.f32 %v457, %v1383
      %v1398 = vmul.f32 %v458, %v1383
      %v1399 = vmul.f32 %v459, %v1383
      %v1400 = vmul.f32 %v460, %v1383
      %v1401 = vmul.f32 %v461, %v1383
      %v1402 = vmul.f32 %v462, %v1383
      %v1403 = vmul.f32 %v463, %v1383
      %v1404 = vmul.f32 %v464, %v1383
      %v1405 = vmul.f32 %v465, %v1383
      %v1406 = vmul.f32 %v466, %v1383
      %v1407 = vmul.f32 %v467, %v1383
      %v1408 = vmul.f32 %v468, %v1383
      %v1409 = vmul.f32 %v469, %v1383
      %v1410 = vmul.f32 %v470, %v1383
      %v1411 = vmul.f32 %v471, %v1383
      %v1412 = vmul.f32 %v472, %v1383
      %v1413 = vmul.f32 %v473, %v1383
      %v1414 = vmul.f32 %v1383, 0.0
      %v1415 = vadd.f32 %v1350, %v1384
      %v1416 = vadd.f32 %v1351, %v1385
      %v1417 = vadd.f32 %v1352, %v1386
      %v1418 = vadd.f32 %v1353, %v1387
      %v1419 = vadd.f32 %v1354, %v1388
      %v1420 = vadd.f32 %v1355, %v1389
      %v1421 = vadd.f32 %v1356, %v1390
      %v1422 = vadd.f32 %v1357, %v1391
      %v1423 = vadd.f32 %v1358, %v1392
      %v1424 = vadd.f32 %v1359, %v1393
      %v1425 = vadd.f32 %v1360, %v1394
      %v1426 = vadd.f32 %v1361, %v1395
      %v1427 = vadd.f32 %v1362, %v1396
      %v1428 = vadd.f32 %v1363, %v1397
      %v1429 = vadd.f32 %v1364, %v1398
      %v1430 = vadd.f32 %v1365, %v1399
      %v1431 = vadd.f32 %v1366, %v1400
      %v1432 = vadd.f32 %v1367, %v1401
      %v1433 = vadd.f32 %v1368, %v1402
      %v1434 = vadd.f32 %v1369, %v1403
      %v1435 = vadd.f32 %v1370, %v1404
      %v1436 = vadd.f32 %v1371, %v1405
      %v1437 = vadd.f32 %v1372, %v1406
      %v1438 = vadd.f32 %v1373, %v1407
      %v1439 = vadd.f32 %v1374, %v1408
      %v1440 = vadd.f32 %v1375, %v1409
      %v1441 = vadd.f32 %v1376, %v1410
      %v1442 = vadd.f32 %v1377, %v1411
      %v1443 = vadd.f32 %v1378, %v1412
      %v1444 = vadd.f32 %v1379, %v1413
      %v1445 = vadd.f32 %v1380, %v1414
      %v1446 = vadd.f32 %v1381, %v1414
      %v1447 = vld [vmem:[%s3 + $0x2] sm:$0x1]
      %v1448 = vperm.slane %v1447, 0
      %v1449 = vmul.f32 %v1448, 0.0
      %v1450 = vmul.f32 %v1022, %v1448
      %v1451 = vmul.f32 %v1023, %v1448
      %v1452 = vmul.f32 %v1024, %v1448
      %v1453 = vmul.f32 %v1025, %v1448
      %v1454 = vmul.f32 %v1026, %v1448
      %v1455 = vmul.f32 %v1027, %v1448
      %v1456 = vmul.f32 %v1028, %v1448
      %v1457 = vmul.f32 %v1029, %v1448
      %v1458 = vmul.f32 %v1030, %v1448
      %v1459 = vmul.f32 %v1031, %v1448
      %v1460 = vmul.f32 %v1032, %v1448
      %v1461 = vmul.f32 %v1033, %v1448
      %v1462 = vmul.f32 %v1034, %v1448
      %v1463 = vmul.f32 %v1035, %v1448
      %v1464 = vmul.f32 %v1036, %v1448
      %v1465 = vmul.f32 %v1037, %v1448
      %v1466 = vmul.f32 %v1038, %v1448
      %v1467 = vmul.f32 %v1039, %v1448
      %v1468 = vmul.f32 %v1040, %v1448
      %v1469 = vmul.f32 %v1041, %v1448
      %v1470 = vmul.f32 %v1042, %v1448
      %v1471 = vmul.f32 %v1043, %v1448
      %v1472 = vmul.f32 %v1044, %v1448
      %v1473 = vmul.f32 %v1045, %v1448
      %v1474 = vmul.f32 %v1046, %v1448
      %v1475 = vmul.f32 %v1047, %v1448
      %v1476 = vmul.f32 %v1048, %v1448
      %v1477 = vmul.f32 %v1049, %v1448
      %v1478 = vmul.f32 %v1050, %v1448
      %v1479 = vmul.f32 %v1051, %v1448
      %v1480 = vadd.f32 %v1415, %v1449
      %v1481 = vadd.f32 %v1416, %v1449
      %v1482 = vadd.f32 %v1417, %v1450
      %v1483 = vadd.f32 %v1418, %v1451
      %v1484 = vadd.f32 %v1419, %v1452
      %v1485 = vadd.f32 %v1420, %v1453
      %v1486 = vadd.f32 %v1421, %v1454
      %v1487 = vadd.f32 %v1422, %v1455
      %v1488 = vadd.f32 %v1423, %v1456
      %v1489 = vadd.f32 %v1424, %v1457
      %v1490 = vadd.f32 %v1425, %v1458
      %v1491 = vadd.f32 %v1426, %v1459
      %v1492 = vadd.f32 %v1427, %v1460
      %v1493 = vadd.f32 %v1428, %v1461
      %v1494 = vadd.f32 %v1429, %v1462
      %v1495 = vadd.f32 %v1430, %v1463
      %v1496 = vadd.f32 %v1431, %v1464
      %v1497 = vadd.f32 %v1432, %v1465
      %v1498 = vadd.f32 %v1433, %v1466
      %v1499 = vadd.f32 %v1434, %v1467
      %v1500 = vadd.f32 %v1435, %v1468
      %v1501 = vadd.f32 %v1436, %v1469
      %v1502 = vadd.f32 %v1437, %v1470
      %v1503 = vadd.f32 %v1438, %v1471
      %v1504 = vadd.f32 %v1439, %v1472
      %v1505 = vadd.f32 %v1440, %v1473
      %v1506 = vadd.f32 %v1441, %v1474
      %v1507 = vadd.f32 %v1442, %v1475
      %v1508 = vadd.f32 %v1443, %v1476
      %v1509 = vadd.f32 %v1444, %v1477
      %v1510 = vadd.f32 %v1445, %v1478
      %v1511 = vadd.f32 %v1446, %v1479
      %v1512 = vld [vmem:[%s1118 + $0x2] sm:$0x1]
      %v1513 = vperm.slane %v1512, 0
      %v1514 = vmul.f32 %v1022, %v1513
      %v1515 = vmul.f32 %v1023, %v1513
      %v1516 = vmul.f32 %v1024, %v1513
      %v1517 = vmul.f32 %v1025, %v1513
      %v1518 = vmul.f32 %v1026, %v1513
      %v1519 = vmul.f32 %v1027, %v1513
      %v1520 = vmul.f32 %v1028, %v1513
      %v1521 = vmul.f32 %v1029, %v1513
      %v1522 = vmul.f32 %v1030, %v1513
      %v1523 = vmul.f32 %v1031, %v1513
      %v1524 = vmul.f32 %v1032, %v1513
      %v1525 = vmul.f32 %v1033, %v1513
      %v1526 = vmul.f32 %v1034, %v1513
      %v1527 = vmul.f32 %v1035, %v1513
      %v1528 = vmul.f32 %v1036, %v1513
      %v1529 = vmul.f32 %v1037, %v1513
      %v1530 = vmul.f32 %v1038, %v1513
      %v1531 = vmul.f32 %v1039, %v1513
      %v1532 = vmul.f32 %v1040, %v1513
      %v1533 = vmul.f32 %v1041, %v1513
      %v1534 = vmul.f32 %v1042, %v1513
      %v1535 = vmul.f32 %v1043, %v1513
      %v1536 = vmul.f32 %v1044, %v1513
      %v1537 = vmul.f32 %v1045, %v1513
      %v1538 = vmul.f32 %v1046, %v1513
      %v1539 = vmul.f32 %v1047, %v1513
      %v1540 = vmul.f32 %v1048, %v1513
      %v1541 = vmul.f32 %v1049, %v1513
      %v1542 = vmul.f32 %v1050, %v1513
      %v1543 = vmul.f32 %v1051, %v1513
      %v1544 = vmul.f32 %v1052, %v1513
      %v1545 = vmul.f32 %v1053, %v1513
      %v1546 = vadd.f32 %v1480, %v1514
      %v1547 = vadd.f32 %v1481, %v1515
      %v1548 = vadd.f32 %v1482, %v1516
      %v1549 = vadd.f32 %v1483, %v1517
      %v1550 = vadd.f32 %v1484, %v1518
      %v1551 = vadd.f32 %v1485, %v1519
      %v1552 = vadd.f32 %v1486, %v1520
      %v1553 = vadd.f32 %v1487, %v1521
      %v1554 = vadd.f32 %v1488, %v1522
      %v1555 = vadd.f32 %v1489, %v1523
      %v1556 = vadd.f32 %v1490, %v1524
      %v1557 = vadd.f32 %v1491, %v1525
      %v1558 = vadd.f32 %v1492, %v1526
      %v1559 = vadd.f32 %v1493, %v1527
      %v1560 = vadd.f32 %v1494, %v1528
      %v1561 = vadd.f32 %v1495, %v1529
      %v1562 = vadd.f32 %v1496, %v1530
      %v1563 = vadd.f32 %v1497, %v1531
      %v1564 = vadd.f32 %v1498, %v1532
      %v1565 = vadd.f32 %v1499, %v1533
      %v1566 = vadd.f32 %v1500, %v1534
      %v1567 = vadd.f32 %v1501, %v1535
      %v1568 = vadd.f32 %v1502, %v1536
      %v1569 = vadd.f32 %v1503, %v1537
      %v1570 = vadd.f32 %v1504, %v1538
      %v1571 = vadd.f32 %v1505, %v1539
      %v1572 = vadd.f32 %v1506, %v1540
      %v1573 = vadd.f32 %v1507, %v1541
      %v1574 = vadd.f32 %v1508, %v1542
      %v1575 = vadd.f32 %v1509, %v1543
      %v1576 = vadd.f32 %v1510, %v1544
      %v1577 = vadd.f32 %v1511, %v1545
      %v1578 = vld [vmem:[%s1185 + $0x2] sm:$0x1]
      %v1579 = vperm.slane %v1578, 0
      %v1580 = vmul.f32 %v1024, %v1579
      %v1581 = vmul.f32 %v1025, %v1579
      %v1582 = vmul.f32 %v1026, %v1579
      %v1583 = vmul.f32 %v1027, %v1579
      %v1584 = vmul.f32 %v1028, %v1579
      %v1585 = vmul.f32 %v1029, %v1579
      %v1586 = vmul.f32 %v1030, %v1579
      %v1587 = vmul.f32 %v1031, %v1579
      %v1588 = vmul.f32 %v1032, %v1579
      %v1589 = vmul.f32 %v1033, %v1579
      %v1590 = vmul.f32 %v1034, %v1579
      %v1591 = vmul.f32 %v1035, %v1579
      %v1592 = vmul.f32 %v1036, %v1579
      %v1593 = vmul.f32 %v1037, %v1579
      %v1594 = vmul.f32 %v1038, %v1579
      %v1595 = vmul.f32 %v1039, %v1579
      %v1596 = vmul.f32 %v1040, %v1579
      %v1597 = vmul.f32 %v1041, %v1579
      %v1598 = vmul.f32 %v1042, %v1579
      %v1599 = vmul.f32 %v1043, %v1579
      %v1600 = vmul.f32 %v1044, %v1579
      %v1601 = vmul.f32 %v1045, %v1579
      %v1602 = vmul.f32 %v1046, %v1579
      %v1603 = vmul.f32 %v1047, %v1579
      %v1604 = vmul.f32 %v1048, %v1579
      %v1605 = vmul.f32 %v1049, %v1579
      %v1606 = vmul.f32 %v1050, %v1579
      %v1607 = vmul.f32 %v1051, %v1579
      %v1608 = vmul.f32 %v1052, %v1579
      %v1609 = vmul.f32 %v1053, %v1579
      %v1610 = vmul.f32 %v1579, 0.0
      %v1611 = vadd.f32 %v1546, %v1580
      %v1612 = vadd.f32 %v1547, %v1581
      %v1613 = vadd.f32 %v1548, %v1582
      %v1614 = vadd.f32 %v1549, %v1583
      %v1615 = vadd.f32 %v1550, %v1584
      %v1616 = vadd.f32 %v1551, %v1585
      %v1617 = vadd.f32 %v1552, %v1586
      %v1618 = vadd.f32 %v1553, %v1587
      %v1619 = vadd.f32 %v1554, %v1588
      %v1620 = vadd.f32 %v1555, %v1589
      %v1621 = vadd.f32 %v1556, %v1590
      %v1622 = vadd.f32 %v1557, %v1591
      %v1623 = vadd.f32 %v1558, %v1592
      %v1624 = vadd.f32 %v1559, %v1593
      %v1625 = vadd.f32 %v1560, %v1594
      %v1626 = vadd.f32 %v1561, %v1595
      %v1627 = vadd.f32 %v1562, %v1596
      %v1628 = vadd.f32 %v1563, %v1597
      %v1629 = vadd.f32 %v1564, %v1598
      %v1630 = vadd.f32 %v1565, %v1599
      %v1631 = vadd.f32 %v1566, %v1600
      %v1632 = vadd.f32 %v1567, %v1601
      %v1633 = vadd.f32 %v1568, %v1602
      %v1634 = vadd.f32 %v1569, %v1603
      %v1635 = vadd.f32 %v1570, %v1604
      %v1636 = vadd.f32 %v1571, %v1605
      %v1637 = vadd.f32 %v1572, %v1606
      %v1638 = vadd.f32 %v1573, %v1607
      %v1639 = vadd.f32 %v1574, %v1608
      %v1640 = vadd.f32 %v1575, %v1609
      %v1641 = vadd.f32 %v1576, %v1610
      %v1642 = vadd.f32 %v1577, %v1610
      %v1643 = vld [vmem:[%s4] sm:$0x1]
      %v1645 = vperm.slane %v1643, 0
      %v1647 = vadd.f32 %v1611, %v1645
      %v1648 = vadd.f32 %v1612, %v1645
      %v1649 = vadd.f32 %v1613, %v1645
      %v1650 = vadd.f32 %v1614, %v1645
      %v1651 = vadd.f32 %v1615, %v1645
      %v1652 = vadd.f32 %v1616, %v1645
      %v1653 = vadd.f32 %v1617, %v1645
      %v1654 = vadd.f32 %v1618, %v1645
      %v1655 = vadd.f32 %v1619, %v1645
      %v1656 = vadd.f32 %v1620, %v1645
      %v1657 = vadd.f32 %v1621, %v1645
      %v1658 = vadd.f32 %v1622, %v1645
      %v1659 = vadd.f32 %v1623, %v1645
      %v1660 = vadd.f32 %v1624, %v1645
      %v1661 = vadd.f32 %v1625, %v1645
      %v1662 = vadd.f32 %v1626, %v1645
      %v1663 = vadd.f32 %v1627, %v1645
      %v1664 = vadd.f32 %v1628, %v1645
      %v1665 = vadd.f32 %v1629, %v1645
      %v1666 = vadd.f32 %v1630, %v1645
      %v1667 = vadd.f32 %v1631, %v1645
      %v1668 = vadd.f32 %v1632, %v1645
      %v1669 = vadd.f32 %v1633, %v1645
      %v1670 = vadd.f32 %v1634, %v1645
      %v1671 = vadd.f32 %v1635, %v1645
      %v1672 = vadd.f32 %v1636, %v1645
      %v1673 = vadd.f32 %v1637, %v1645
      %v1674 = vadd.f32 %v1638, %v1645
      %v1675 = vadd.f32 %v1639, %v1645
      %v1676 = vadd.f32 %v1640, %v1645
      %v1677 = vadd.f32 %v1641, %v1645
      %v1678 = vadd.f32 %v1642, %v1645
      %vm1679 = vcmask 261120
      %v1680 = vsel %vm1679, %v1647, 0.0
      %v1681 = vsel %vm1679, %v1648, 0.0
      %v1682 = vadd.f32 %v1680, %v1681
      %v1683 = vsel %vm1679, %v1649, 0.0
      %v1684 = vadd.f32 %v1682, %v1683
      %v1685 = vsel %vm1679, %v1650, 0.0
      %v1686 = vadd.f32 %v1684, %v1685
      %v1687 = vsel %vm1679, %v1651, 0.0
      %v1688 = vadd.f32 %v1686, %v1687
      %v1689 = vsel %vm1679, %v1652, 0.0
      %v1690 = vadd.f32 %v1688, %v1689
      %v1691 = vsel %vm1679, %v1653, 0.0
      %v1692 = vadd.f32 %v1690, %v1691
      %v1693 = vsel %vm1679, %v1654, 0.0
      %v1694 = vadd.f32 %v1692, %v1693
      %v1695 = vsel %vm1679, %v1655, 0.0
      %v1696 = vadd.f32 %v1694, %v1695
      %v1697 = vsel %vm1679, %v1656, 0.0
      %v1698 = vadd.f32 %v1696, %v1697
      %v1699 = vsel %vm1679, %v1657, 0.0
      %v1700 = vadd.f32 %v1698, %v1699
      %v1701 = vsel %vm1679, %v1658, 0.0
      %v1702 = vadd.f32 %v1700, %v1701
      %v1703 = vsel %vm1679, %v1659, 0.0
      %v1704 = vadd.f32 %v1702, %v1703
      %v1705 = vsel %vm1679, %v1660, 0.0
      %v1706 = vadd.f32 %v1704, %v1705
      %v1707 = vsel %vm1679, %v1661, 0.0
      %v1708 = vadd.f32 %v1706, %v1707
      %v1709 = vsel %vm1679, %v1662, 0.0
      %v1710 = vadd.f32 %v1708, %v1709
      %v1711 = vsel %vm1679, %v1663, 0.0
      %v1712 = vadd.f32 %v1710, %v1711
      %v1713 = vsel %vm1679, %v1664, 0.0
      %v1714 = vadd.f32 %v1712, %v1713
      %v1715 = vsel %vm1679, %v1665, 0.0
      %v1716 = vadd.f32 %v1714, %v1715
      %v1717 = vsel %vm1679, %v1666, 0.0
      %v1718 = vadd.f32 %v1716, %v1717
      %v1719 = vsel %vm1679, %v1667, 0.0
      %v1720 = vadd.f32 %v1718, %v1719
      %v1721 = vsel %vm1679, %v1668, 0.0
      %v1722 = vadd.f32 %v1720, %v1721
      %v1723 = vsel %vm1679, %v1669, 0.0
      %v1724 = vadd.f32 %v1722, %v1723
      %v1725 = vsel %vm1679, %v1670, 0.0
      %v1726 = vadd.f32 %v1724, %v1725
      %v1727 = vsel %vm1679, %v1671, 0.0
      %v1728 = vadd.f32 %v1726, %v1727
      %v1729 = vsel %vm1679, %v1672, 0.0
      %v1730 = vadd.f32 %v1728, %v1729
      %v1731 = vsel %vm1679, %v1673, 0.0
      %v1732 = vadd.f32 %v1730, %v1731
      %v1733 = vsel %vm1679, %v1674, 0.0
      %v1734 = vadd.f32 %v1732, %v1733
      %v1735 = vsel %vm1679, %v1675, 0.0
      %v1736 = vadd.f32 %v1734, %v1735
      %v1737 = vsel %vm1679, %v1676, 0.0
      %v1738 = vadd.f32 %v1736, %v1737
      %v1739 = vsel %vm1679, %v1677, 0.0
      %v1740 = vadd.f32 %v1738, %v1739
      %v1741 = vsel %vm1679, %v1678, 0.0
      %v1742 = vadd.f32 %v1740, %v1741
      %v1743 = vrot.slane %v1742, 4
      %v1744 = vadd.f32 %v1742, %v1743
      %v1745 = vrot.slane %v1744, 2
      %v1746 = vadd.f32 %v1744, %v1745
      %v1747 = vrot.slane %v1746, 1
      %v1748 = vadd.f32 %v1746, %v1747
      %v1749 = vmul.f32 %v1647, %v1647
      %v1750 = vmul.f32 %v1648, %v1648
      %v1751 = vmul.f32 %v1649, %v1649
      %v1752 = vmul.f32 %v1650, %v1650
      %v1753 = vmul.f32 %v1651, %v1651
      %v1754 = vmul.f32 %v1652, %v1652
      %v1755 = vmul.f32 %v1653, %v1653
      %v1756 = vmul.f32 %v1654, %v1654
      %v1757 = vmul.f32 %v1655, %v1655
      %v1758 = vmul.f32 %v1656, %v1656
      %v1759 = vmul.f32 %v1657, %v1657
      %v1760 = vmul.f32 %v1658, %v1658
      %v1761 = vmul.f32 %v1659, %v1659
      %v1762 = vmul.f32 %v1660, %v1660
      %v1763 = vmul.f32 %v1661, %v1661
      %v1764 = vmul.f32 %v1662, %v1662
      %v1765 = vmul.f32 %v1663, %v1663
      %v1766 = vmul.f32 %v1664, %v1664
      %v1767 = vmul.f32 %v1665, %v1665
      %v1768 = vmul.f32 %v1666, %v1666
      %v1769 = vmul.f32 %v1667, %v1667
      %v1770 = vmul.f32 %v1668, %v1668
      %v1771 = vmul.f32 %v1669, %v1669
      %v1772 = vmul.f32 %v1670, %v1670
      %v1773 = vmul.f32 %v1671, %v1671
      %v1774 = vmul.f32 %v1672, %v1672
      %v1775 = vmul.f32 %v1673, %v1673
      %v1776 = vmul.f32 %v1674, %v1674
      %v1777 = vmul.f32 %v1675, %v1675
      %v1778 = vmul.f32 %v1676, %v1676
      %v1779 = vmul.f32 %v1677, %v1677
      %v1780 = vmul.f32 %v1678, %v1678
      %v1781 = vsel %vm1679, %v1749, 0.0
      %v1782 = vsel %vm1679, %v1750, 0.0
      %v1783 = vadd.f32 %v1781, %v1782
      %v1784 = vsel %vm1679, %v1751, 0.0
      %v1785 = vadd.f32 %v1783, %v1784
      %v1786 = vsel %vm1679, %v1752, 0.0
      %v1787 = vadd.f32 %v1785, %v1786
      %v1788 = vsel %vm1679, %v1753, 0.0
      %v1789 = vadd.f32 %v1787, %v1788
      %v1790 = vsel %vm1679, %v1754, 0.0
      %v1791 = vadd.f32 %v1789, %v1790
      %v1792 = vsel %vm1679, %v1755, 0.0
      %v1793 = vadd.f32 %v1791, %v1792
      %v1794 = vsel %vm1679, %v1756, 0.0
      %v1795 = vadd.f32 %v1793, %v1794
      %v1796 = vsel %vm1679, %v1757, 0.0
      %v1797 = vadd.f32 %v1795, %v1796
      %v1798 = vsel %vm1679, %v1758, 0.0
      %v1799 = vadd.f32 %v1797, %v1798
      %v1800 = vsel %vm1679, %v1759, 0.0
      %v1801 = vadd.f32 %v1799, %v1800
      %v1802 = vsel %vm1679, %v1760, 0.0
      %v1803 = vadd.f32 %v1801, %v1802
      %v1804 = vsel %vm1679, %v1761, 0.0
      %v1805 = vadd.f32 %v1803, %v1804
      %v1806 = vsel %vm1679, %v1762, 0.0
      %v1807 = vadd.f32 %v1805, %v1806
      %v1808 = vsel %vm1679, %v1763, 0.0
      %v1809 = vadd.f32 %v1807, %v1808
      %v1810 = vsel %vm1679, %v1764, 0.0
      %v1811 = vadd.f32 %v1809, %v1810
      %v1812 = vsel %vm1679, %v1765, 0.0
      %v1813 = vadd.f32 %v1811, %v1812
      %v1814 = vsel %vm1679, %v1766, 0.0
      %v1815 = vadd.f32 %v1813, %v1814
      %v1816 = vsel %vm1679, %v1767, 0.0
      %v1817 = vadd.f32 %v1815, %v1816
      %v1818 = vsel %vm1679, %v1768, 0.0
      %v1819 = vadd.f32 %v1817, %v1818
      %v1820 = vsel %vm1679, %v1769, 0.0
      %v1821 = vadd.f32 %v1819, %v1820
      %v1822 = vsel %vm1679, %v1770, 0.0
      %v1823 = vadd.f32 %v1821, %v1822
      %v1824 = vsel %vm1679, %v1771, 0.0
      %v1825 = vadd.f32 %v1823, %v1824
      %v1826 = vsel %vm1679, %v1772, 0.0
      %v1827 = vadd.f32 %v1825, %v1826
      %v1828 = vsel %vm1679, %v1773, 0.0
      %v1829 = vadd.f32 %v1827, %v1828
      %v1830 = vsel %vm1679, %v1774, 0.0
      %v1831 = vadd.f32 %v1829, %v1830
      %v1832 = vsel %vm1679, %v1775, 0.0
      %v1833 = vadd.f32 %v1831, %v1832
      %v1834 = vsel %vm1679, %v1776, 0.0
      %v1835 = vadd.f32 %v1833, %v1834
      %v1836 = vsel %vm1679, %v1777, 0.0
      %v1837 = vadd.f32 %v1835, %v1836
      %v1838 = vsel %vm1679, %v1778, 0.0
      %v1839 = vadd.f32 %v1837, %v1838
      %v1840 = vsel %vm1679, %v1779, 0.0
      %v1841 = vadd.f32 %v1839, %v1840
      %v1842 = vsel %vm1679, %v1780, 0.0
      %v1843 = vadd.f32 %v1841, %v1842
      %v1844 = vrot.slane %v1843, 4
      %v1845 = vadd.f32 %v1843, %v1844
      %v1846 = vrot.slane %v1845, 2
      %v1847 = vadd.f32 %v1845, %v1846
      %v1848 = vrot.slane %v1847, 1
      %v1849 = vadd.f32 %v1847, %v1848
      %v1850 = vld [vmem:[%s5] sm:$0xff]
      %v1851 = vld [vmem:[%s5 + $0x8] sm:$0xff]
      %v1852 = vld [vmem:[%s5 + $0x10] sm:$0xff]
      %v1853 = vld [vmem:[%s5 + $0x18] sm:$0xff]
      %v1855 = vsel %vm1679, %v1748, 0
      %1857 = vmatpush.msra.mxu0 0.0
      %1858 = vmatpush.msra.mxu0 0.0
      %1859 = vmatpush.msra.mxu0 0.0
      %1860 = vmatpush.msra.mxu0 0.0
      %1861 = vmatpush.msra.mxu0 0.0
      %1862 = vmatpush.msra.mxu0 0.0
      %1863 = vmatpush.msra.mxu0 0.0
      %1864 = vmatpush.msra.mxu0 0.0
      %1865 = vmatpush.msra.mxu0 0.0
      %1866 = vmatpush.msra.mxu0 0.0
      %1867 = vmatpush.msra.mxu0 0.0
      %1868 = vmatpush.msra.mxu0 0.0
      %1869 = vmatpush.msra.mxu0 %v1853
      %1870 = vmatpush.msra.mxu0 %v1852
      %1871 = vmatpush.msra.mxu0 %v1851
      %1872 = vmatpush.msra.mxu0 %v1850
      %1873 = vmatmul.f32.gmra.mxu0 %v1855
      %v1874 = vpop.f32.mrf.mxu0
      %v1875 = vadd.f32 0.0, %v1874
      %1876 = vdwg.mxu0
      %v1878 = vsel %vm1679, %v1849, 0
      %1880 = vmatpush.msra.mxu0 0.0
      %1881 = vmatpush.msra.mxu0 0.0
      %1882 = vmatpush.msra.mxu0 0.0
      %1883 = vmatpush.msra.mxu0 0.0
      %1884 = vmatpush.msra.mxu0 0.0
      %1885 = vmatpush.msra.mxu0 0.0
      %1886 = vmatpush.msra.mxu0 0.0
      %1887 = vmatpush.msra.mxu0 0.0
      %1888 = vmatpush.msra.mxu0 0.0
      %1889 = vmatpush.msra.mxu0 0.0
      %1890 = vmatpush.msra.mxu0 0.0
      %1891 = vmatpush.msra.mxu0 0.0
      %1892 = vmatpush.msra.mxu0 %v1853
      %1893 = vmatpush.msra.mxu0 %v1852
      %1894 = vmatpush.msra.mxu0 %v1851
      %1895 = vmatpush.msra.mxu0 %v1850
      %1896 = vmatmul.f32.gmra.mxu0 %v1878
      %v1897 = vpop.f32.mrf.mxu0
      %v1898 = vadd.f32 0.0, %v1897
      %1899 = vdwg.mxu0
      %v1900 = vmul.f32 %v1875, %v1875
      %v1901 = vsub.f32 %v1898, %v1900
      %v1902 = vmax.f32 %v1901, 0.0
      %v1903 = vperm.slane %v1875, 0
      %v1904 = vsub.f32 %v1647, %v1903
      %v1905 = vsub.f32 %v1648, %v1903
      %v1906 = vsub.f32 %v1649, %v1903
      %v1907 = vsub.f32 %v1650, %v1903
      %v1908 = vsub.f32 %v1651, %v1903
      %v1909 = vsub.f32 %v1652, %v1903
      %v1910 = vsub.f32 %v1653, %v1903
      %v1911 = vsub.f32 %v1654, %v1903
      %v1912 = vsub.f32 %v1655, %v1903
      %v1913 = vsub.f32 %v1656, %v1903
      %v1914 = vsub.f32 %v1657, %v1903
      %v1915 = vsub.f32 %v1658, %v1903
      %v1916 = vsub.f32 %v1659, %v1903
      %v1917 = vsub.f32 %v1660, %v1903
      %v1918 = vsub.f32 %v1661, %v1903
      %v1919 = vsub.f32 %v1662, %v1903
      %v1920 = vsub.f32 %v1663, %v1903
      %v1921 = vsub.f32 %v1664, %v1903
      %v1922 = vsub.f32 %v1665, %v1903
      %v1923 = vsub.f32 %v1666, %v1903
      %v1924 = vsub.f32 %v1667, %v1903
      %v1925 = vsub.f32 %v1668, %v1903
      %v1926 = vsub.f32 %v1669, %v1903
      %v1927 = vsub.f32 %v1670, %v1903
      %v1928 = vsub.f32 %v1671, %v1903
      %v1929 = vsub.f32 %v1672, %v1903
      %v1930 = vsub.f32 %v1673, %v1903
      %v1931 = vsub.f32 %v1674, %v1903
      %v1932 = vsub.f32 %v1675, %v1903
      %v1933 = vsub.f32 %v1676, %v1903
      %v1934 = vsub.f32 %v1677, %v1903
      %v1935 = vsub.f32 %v1678, %v1903
      %v1936 = vadd.f32 %v1902, 1e-05
      %v1937 = vrsqrt.pop %v1936
      %v1938 = vmul.f32 %v1937, %v1936
      %v1939 = vmul.f32 %v1938, %v1937
      %v1940 = vmul.f32 0.5, %v1939
      %v1941 = vsub.f32 1.5, %v1940
      %v1942 = vmul.f32 %v1937, %v1941
      %vm1943 = vweird.f32 %v1936
      %vm1944 = vweird.f32 %v1937
      %vm1945 = vmor %vm1943, %vm1944
      %v1946 = vsel %vm1945, %v1937, %v1942
      %v1947 = vperm.slane %v1946, 0
      %v1948 = vmul.f32 %v1904, %v1947
      %v1949 = vmul.f32 %v1905, %v1947
      %v1950 = vmul.f32 %v1906, %v1947
      %v1951 = vmul.f32 %v1907, %v1947
      %v1952 = vmul.f32 %v1908, %v1947
      %v1953 = vmul.f32 %v1909, %v1947
      %v1954 = vmul.f32 %v1910, %v1947
      %v1955 = vmul.f32 %v1911, %v1947
      %v1956 = vmul.f32 %v1912, %v1947
      %v1957 = vmul.f32 %v1913, %v1947
      %v1958 = vmul.f32 %v1914, %v1947
      %v1959 = vmul.f32 %v1915, %v1947
      %v1960 = vmul.f32 %v1916, %v1947
      %v1961 = vmul.f32 %v1917, %v1947
      %v1962 = vmul.f32 %v1918, %v1947
      %v1963 = vmul.f32 %v1919, %v1947
      %v1964 = vmul.f32 %v1920, %v1947
      %v1965 = vmul.f32 %v1921, %v1947
      %v1966 = vmul.f32 %v1922, %v1947
      %v1967 = vmul.f32 %v1923, %v1947
      %v1968 = vmul.f32 %v1924, %v1947
      %v1969 = vmul.f32 %v1925, %v1947
      %v1970 = vmul.f32 %v1926, %v1947
      %v1971 = vmul.f32 %v1927, %v1947
      %v1972 = vmul.f32 %v1928, %v1947
      %v1973 = vmul.f32 %v1929, %v1947
      %v1974 = vmul.f32 %v1930, %v1947
      %v1975 = vmul.f32 %v1931, %v1947
      %v1976 = vmul.f32 %v1932, %v1947
      %v1977 = vmul.f32 %v1933, %v1947
      %v1978 = vmul.f32 %v1934, %v1947
      %v1979 = vmul.f32 %v1935, %v1947
      %v1980 = vld [vmem:[%s6] sm:$0x1]
      %v1982 = vperm.slane %v1980, 0
      %v1984 = vmul.f32 %v1948, %v1982
      %v1985 = vmul.f32 %v1949, %v1982
      %v1986 = vmul.f32 %v1950, %v1982
      %v1987 = vmul.f32 %v1951, %v1982
      %v1988 = vmul.f32 %v1952, %v1982
      %v1989 = vmul.f32 %v1953, %v1982
      %v1990 = vmul.f32 %v1954, %v1982
      %v1991 = vmul.f32 %v1955, %v1982
      %v1992 = vmul.f32 %v1956, %v1982
      %v1993 = vmul.f32 %v1957, %v1982
      %v1994 = vmul.f32 %v1958, %v1982
      %v1995 = vmul.f32 %v1959, %v1982
      %v1996 = vmul.f32 %v1960, %v1982
      %v1997 = vmul.f32 %v1961, %v1982
      %v1998 = vmul.f32 %v1962, %v1982
      %v1999 = vmul.f32 %v1963, %v1982
      %v2000 = vmul.f32 %v1964, %v1982
      %v2001 = vmul.f32 %v1965, %v1982
      %v2002 = vmul.f32 %v1966, %v1982
      %v2003 = vmul.f32 %v1967, %v1982
      %v2004 = vmul.f32 %v1968, %v1982
      %v2005 = vmul.f32 %v1969, %v1982
      %v2006 = vmul.f32 %v1970, %v1982
      %v2007 = vmul.f32 %v1971, %v1982
      %v2008 = vmul.f32 %v1972, %v1982
      %v2009 = vmul.f32 %v1973, %v1982
      %v2010 = vmul.f32 %v1974, %v1982
      %v2011 = vmul.f32 %v1975, %v1982
      %v2012 = vmul.f32 %v1976, %v1982
      %v2013 = vmul.f32 %v1977, %v1982
      %v2014 = vmul.f32 %v1978, %v1982
      %v2015 = vmul.f32 %v1979, %v1982
      %v2016 = vld [vmem:[%s7] sm:$0x1]
      %v2018 = vperm.slane %v2016, 0
      %v2020 = vadd.f32 %v1984, %v2018
      %v2021 = vadd.f32 %v1985, %v2018
      %v2022 = vadd.f32 %v1986, %v2018
      %v2023 = vadd.f32 %v1987, %v2018
      %v2024 = vadd.f32 %v1988, %v2018
      %v2025 = vadd.f32 %v1989, %v2018
      %v2026 = vadd.f32 %v1990, %v2018
      %v2027 = vadd.f32 %v1991, %v2018
      %v2028 = vadd.f32 %v1992, %v2018
      %v2029 = vadd.f32 %v1993, %v2018
      %v2030 = vadd.f32 %v1994, %v2018
      %v2031 = vadd.f32 %v1995, %v2018
      %v2032 = vadd.f32 %v1996, %v2018
      %v2033 = vadd.f32 %v1997, %v2018
      %v2034 = vadd.f32 %v1998, %v2018
      %v2035 = vadd.f32 %v1999, %v2018
      %v2036 = vadd.f32 %v2000, %v2018
      %v2037 = vadd.f32 %v2001, %v2018
      %v2038 = vadd.f32 %v2002, %v2018
      %v2039 = vadd.f32 %v2003, %v2018
      %v2040 = vadd.f32 %v2004, %v2018
      %v2041 = vadd.f32 %v2005, %v2018
      %v2042 = vadd.f32 %v2006, %v2018
      %v2043 = vadd.f32 %v2007, %v2018
      %v2044 = vadd.f32 %v2008, %v2018
      %v2045 = vadd.f32 %v2009, %v2018
      %v2046 = vadd.f32 %v2010, %v2018
      %v2047 = vadd.f32 %v2011, %v2018
      %v2048 = vadd.f32 %v2012, %v2018
      %v2049 = vadd.f32 %v2013, %v2018
      %v2050 = vadd.f32 %v2014, %v2018
      %v2051 = vadd.f32 %v2015, %v2018
      %v2052 = vmax.f32 %v2020, 0.0
      %v2053 = vmax.f32 %v2021, 0.0
      %v2054 = vmax.f32 %v2022, 0.0
      %v2055 = vmax.f32 %v2023, 0.0
      %v2056 = vmax.f32 %v2024, 0.0
      %v2057 = vmax.f32 %v2025, 0.0
      %v2058 = vmax.f32 %v2026, 0.0
      %v2059 = vmax.f32 %v2027, 0.0
      %v2060 = vmax.f32 %v2028, 0.0
      %v2061 = vmax.f32 %v2029, 0.0
      %v2062 = vmax.f32 %v2030, 0.0
      %v2063 = vmax.f32 %v2031, 0.0
      %v2064 = vmax.f32 %v2032, 0.0
      %v2065 = vmax.f32 %v2033, 0.0
      %v2066 = vmax.f32 %v2034, 0.0
      %v2067 = vmax.f32 %v2035, 0.0
      %v2068 = vmax.f32 %v2036, 0.0
      %v2069 = vmax.f32 %v2037, 0.0
      %v2070 = vmax.f32 %v2038, 0.0
      %v2071 = vmax.f32 %v2039, 0.0
      %v2072 = vmax.f32 %v2040, 0.0
      %v2073 = vmax.f32 %v2041, 0.0
      %v2074 = vmax.f32 %v2042, 0.0
      %v2075 = vmax.f32 %v2043, 0.0
      %v2076 = vmax.f32 %v2044, 0.0
      %v2077 = vmax.f32 %v2045, 0.0
      %v2078 = vmax.f32 %v2046, 0.0
      %v2079 = vmax.f32 %v2047, 0.0
      %v2080 = vmax.f32 %v2048, 0.0
      %v2081 = vmax.f32 %v2049, 0.0
      %v2082 = vmax.f32 %v2050, 0.0
      %v2083 = vmax.f32 %v2051, 0.0
      %v2084 = vpack.c.bf16 %v2053, %v2052
      %v2085 = vpack.c.bf16 %v2055, %v2054
      %v2086 = vpack.c.bf16 %v2057, %v2056
      %v2087 = vpack.c.bf16 %v2059, %v2058
      %v2088 = vpack.c.bf16 %v2061, %v2060
      %v2089 = vpack.c.bf16 %v2063, %v2062
      %v2090 = vpack.c.bf16 %v2065, %v2064
      %v2091 = vpack.c.bf16 %v2067, %v2066
      %v2092 = vpack.c.bf16 %v2069, %v2068
      %v2093 = vpack.c.bf16 %v2071, %v2070
      %v2094 = vpack.c.bf16 %v2073, %v2072
      %v2095 = vpack.c.bf16 %v2075, %v2074
      %v2096 = vpack.c.bf16 %v2077, %v2076
      %v2097 = vpack.c.bf16 %v2079, %v2078
      %v2098 = vpack.c.bf16 %v2081, %v2080
      %v2099 = vpack.c.bf16 %v2083, %v2082
      %v2100 = vld [vmem:[%s8] sm:$0xf]
      %v2101 = vld [vmem:[%s8 + $0x4] sm:$0xf]
      %v2102 = vld [vmem:[%s8 + $0x8] sm:$0xf]
      %v2103 = vld [vmem:[%s8 + $0xc] sm:$0xf]
      %v2104 = vld [vmem:[%s9] sm:$0x1]
      %v2106 = vperm.slane %v2104, 0
      %v2112 = vunpack.c.l.b16 %v2100
      %v2113 = vunpack.c.l.b16 %v2101
      %v2114 = vunpack.c.l.b16 %v2102
      %v2115 = vunpack.c.l.b16 %v2103
      %v2116 = vpack.c.b16 %v2113, %v2112
      %v2117 = vpack.c.b16 %v2115, %v2114
      %v2121 = vsel %vm1679, %v2084, 0
      %v2124 = vsel %vm1679, %v2085, 0
      %v2127 = vsel %vm1679, %v2086, 0
      %v2130 = vsel %vm1679, %v2087, 0
      %v2133 = vsel %vm1679, %v2088, 0
      %v2136 = vsel %vm1679, %v2089, 0
      %v2139 = vsel %vm1679, %v2090, 0
      %v2142 = vsel %vm1679, %v2091, 0
      %v2145 = vsel %vm1679, %v2092, 0
      %v2148 = vsel %vm1679, %v2093, 0
      %v2151 = vsel %vm1679, %v2094, 0
      %v2154 = vsel %vm1679, %v2095, 0
      %v2157 = vsel %vm1679, %v2096, 0
      %v2160 = vsel %vm1679, %v2097, 0
      %v2163 = vsel %vm1679, %v2098, 0
      %v2166 = vsel %vm1679, %v2099, 0
      %2168 = vmatpush.bf16.msra.mxu0 0
      %2169 = vmatpush.bf16.msra.mxu0 0
      %2170 = vmatpush.bf16.msra.mxu0 0
      %2171 = vmatpush.bf16.msra.mxu0 0
      %2172 = vmatpush.bf16.msra.mxu0 0
      %2173 = vmatpush.bf16.msra.mxu0 0
      %2174 = vmatpush.bf16.msra.mxu0 %v2117
      %2175 = vmatpush.bf16.msra.mxu0 %v2116
      %2176 = vmatmul.bf16.gmra.mxu0 %v2121
      %v2177 = vpop.f32.mrf.mxu0
      %v2178 = vadd.f32 %v2106, %v2177
      %v2179 = vpop.f32.mrf.mxu0
      %v2180 = vadd.f32 %v2106, %v2179
      %2181 = vmatmul.bf16.gmra.mxu0 %v2124
      %v2182 = vpop.f32.mrf.mxu0
      %v2183 = vadd.f32 %v2106, %v2182
      %v2184 = vpop.f32.mrf.mxu0
      %v2185 = vadd.f32 %v2106, %v2184
      %2186 = vmatmul.bf16.gmra.mxu0 %v2127
      %v2187 = vpop.f32.mrf.mxu0
      %v2188 = vadd.f32 %v2106, %v2187
      %v2189 = vpop.f32.mrf.mxu0
      %v2190 = vadd.f32 %v2106, %v2189
      %2191 = vmatmul.bf16.gmra.mxu0 %v2130
      %v2192 = vpop.f32.mrf.mxu0
      %v2193 = vadd.f32 %v2106, %v2192
      %v2194 = vpop.f32.mrf.mxu0
      %v2195 = vadd.f32 %v2106, %v2194
      %2196 = vmatmul.bf16.gmra.mxu0 %v2133
      %v2197 = vpop.f32.mrf.mxu0
      %v2198 = vadd.f32 %v2106, %v2197
      %v2199 = vpop.f32.mrf.mxu0
      %v2200 = vadd.f32 %v2106, %v2199
      %2201 = vmatmul.bf16.gmra.mxu0 %v2136
      %v2202 = vpop.f32.mrf.mxu0
      %v2203 = vadd.f32 %v2106, %v2202
      %v2204 = vpop.f32.mrf.mxu0
      %v2205 = vadd.f32 %v2106, %v2204
      %2206 = vmatmul.bf16.gmra.mxu0 %v2139
      %v2207 = vpop.f32.mrf.mxu0
      %v2208 = vadd.f32 %v2106, %v2207
      %v2209 = vpop.f32.mrf.mxu0
      %v2210 = vadd.f32 %v2106, %v2209
      %2211 = vmatmul.bf16.gmra.mxu0 %v2142
      %v2212 = vpop.f32.mrf.mxu0
      %v2213 = vadd.f32 %v2106, %v2212
      %v2214 = vpop.f32.mrf.mxu0
      %v2215 = vadd.f32 %v2106, %v2214
      %2216 = vmatmul.bf16.gmra.mxu0 %v2145
      %v2217 = vpop.f32.mrf.mxu0
      %v2218 = vadd.f32 %v2106, %v2217
      %v2219 = vpop.f32.mrf.mxu0
      %v2220 = vadd.f32 %v2106, %v2219
      %2221 = vmatmul.bf16.gmra.mxu0 %v2148
      %v2222 = vpop.f32.mrf.mxu0
      %v2223 = vadd.f32 %v2106, %v2222
      %v2224 = vpop.f32.mrf.mxu0
      %v2225 = vadd.f32 %v2106, %v2224
      %2226 = vmatmul.bf16.gmra.mxu0 %v2151
      %v2227 = vpop.f32.mrf.mxu0
      %v2228 = vadd.f32 %v2106, %v2227
      %v2229 = vpop.f32.mrf.mxu0
      %v2230 = vadd.f32 %v2106, %v2229
      %2231 = vmatmul.bf16.gmra.mxu0 %v2154
      %v2232 = vpop.f32.mrf.mxu0
      %v2233 = vadd.f32 %v2106, %v2232
      %v2234 = vpop.f32.mrf.mxu0
      %v2235 = vadd.f32 %v2106, %v2234
      %2236 = vmatmul.bf16.gmra.mxu0 %v2157
      %v2237 = vpop.f32.mrf.mxu0
      %v2238 = vadd.f32 %v2106, %v2237
      %v2239 = vpop.f32.mrf.mxu0
      %v2240 = vadd.f32 %v2106, %v2239
      %2241 = vmatmul.bf16.gmra.mxu0 %v2160
      %v2242 = vpop.f32.mrf.mxu0
      %v2243 = vadd.f32 %v2106, %v2242
      %v2244 = vpop.f32.mrf.mxu0
      %v2245 = vadd.f32 %v2106, %v2244
      %2246 = vmatmul.bf16.gmra.mxu0 %v2163
      %v2247 = vpop.f32.mrf.mxu0
      %v2248 = vadd.f32 %v2106, %v2247
      %v2249 = vpop.f32.mrf.mxu0
      %v2250 = vadd.f32 %v2106, %v2249
      %2251 = vmatmul.bf16.gmra.mxu0 %v2166
      %v2252 = vpop.f32.mrf.mxu0
      %v2253 = vadd.f32 %v2106, %v2252
      %v2254 = vpop.f32.mrf.mxu0
      %v2255 = vadd.f32 %v2106, %v2254
      %2256 = vdwg.mxu0
      %v2257 = vsel %vm1679, %v2178, 0.0
      %v2258 = vsel %vm1679, %v2180, 0.0
      %v2259 = vadd.f32 %v2257, %v2258
      %v2260 = vsel %vm1679, %v2183, 0.0
      %v2261 = vadd.f32 %v2259, %v2260
      %v2262 = vsel %vm1679, %v2185, 0.0
      %v2263 = vadd.f32 %v2261, %v2262
      %v2264 = vsel %vm1679, %v2188, 0.0
      %v2265 = vadd.f32 %v2263, %v2264
      %v2266 = vsel %vm1679, %v2190, 0.0
      %v2267 = vadd.f32 %v2265, %v2266
      %v2268 = vsel %vm1679, %v2193, 0.0
      %v2269 = vadd.f32 %v2267, %v2268
      %v2270 = vsel %vm1679, %v2195, 0.0
      %v2271 = vadd.f32 %v2269, %v2270
      %v2272 = vsel %vm1679, %v2198, 0.0
      %v2273 = vadd.f32 %v2271, %v2272
      %v2274 = vsel %vm1679, %v2200, 0.0
      %v2275 = vadd.f32 %v2273, %v2274
      %v2276 = vsel %vm1679, %v2203, 0.0
      %v2277 = vadd.f32 %v2275, %v2276
      %v2278 = vsel %vm1679, %v2205, 0.0
      %v2279 = vadd.f32 %v2277, %v2278
      %v2280 = vsel %vm1679, %v2208, 0.0
      %v2281 = vadd.f32 %v2279, %v2280
      %v2282 = vsel %vm1679, %v2210, 0.0
      %v2283 = vadd.f32 %v2281, %v2282
      %v2284 = vsel %vm1679, %v2213, 0.0
      %v2285 = vadd.f32 %v2283, %v2284
      %v2286 = vsel %vm1679, %v2215, 0.0
      %v2287 = vadd.f32 %v2285, %v2286
      %v2288 = vsel %vm1679, %v2218, 0.0
      %v2289 = vadd.f32 %v2287, %v2288
      %v2290 = vsel %vm1679, %v2220, 0.0
      %v2291 = vadd.f32 %v2289, %v2290
      %v2292 = vsel %vm1679, %v2223, 0.0
      %v2293 = vadd.f32 %v2291, %v2292
      %v2294 = vsel %vm1679, %v2225, 0.0
      %v2295 = vadd.f32 %v2293, %v2294
      %v2296 = vsel %vm1679, %v2228, 0.0
      %v2297 = vadd.f32 %v2295, %v2296
      %v2298 = vsel %vm1679, %v2230, 0.0
      %v2299 = vadd.f32 %v2297, %v2298
      %v2300 = vsel %vm1679, %v2233, 0.0
      %v2301 = vadd.f32 %v2299, %v2300
      %v2302 = vsel %vm1679, %v2235, 0.0
      %v2303 = vadd.f32 %v2301, %v2302
      %v2304 = vsel %vm1679, %v2238, 0.0
      %v2305 = vadd.f32 %v2303, %v2304
      %v2306 = vsel %vm1679, %v2240, 0.0
      %v2307 = vadd.f32 %v2305, %v2306
      %v2308 = vsel %vm1679, %v2243, 0.0
      %v2309 = vadd.f32 %v2307, %v2308
      %v2310 = vsel %vm1679, %v2245, 0.0
      %v2311 = vadd.f32 %v2309, %v2310
      %v2312 = vsel %vm1679, %v2248, 0.0
      %v2313 = vadd.f32 %v2311, %v2312
      %v2314 = vsel %vm1679, %v2250, 0.0
      %v2315 = vadd.f32 %v2313, %v2314
      %v2316 = vsel %vm1679, %v2253, 0.0
      %v2317 = vadd.f32 %v2315, %v2316
      %v2318 = vsel %vm1679, %v2255, 0.0
      %v2319 = vadd.f32 %v2317, %v2318
      %v2320 = vrot.slane %v2319, 4
      %v2321 = vadd.f32 %v2319, %v2320
      %v2322 = vrot.slane %v2321, 2
      %v2323 = vadd.f32 %v2321, %v2322
      %v2324 = vrot.slane %v2323, 1
      %v2325 = vadd.f32 %v2323, %v2324
      %v2326 = vmul.f32 %v2178, %v2178
      %v2327 = vmul.f32 %v2180, %v2180
      %v2328 = vmul.f32 %v2183, %v2183
      %v2329 = vmul.f32 %v2185, %v2185
      %v2330 = vmul.f32 %v2188, %v2188
      %v2331 = vmul.f32 %v2190, %v2190
      %v2332 = vmul.f32 %v2193, %v2193
      %v2333 = vmul.f32 %v2195, %v2195
      %v2334 = vmul.f32 %v2198, %v2198
      %v2335 = vmul.f32 %v2200, %v2200
      %v2336 = vmul.f32 %v2203, %v2203
      %v2337 = vmul.f32 %v2205, %v2205
      %v2338 = vmul.f32 %v2208, %v2208
      %v2339 = vmul.f32 %v2210, %v2210
      %v2340 = vmul.f32 %v2213, %v2213
      %v2341 = vmul.f32 %v2215, %v2215
      %v2342 = vmul.f32 %v2218, %v2218
      %v2343 = vmul.f32 %v2220, %v2220
      %v2344 = vmul.f32 %v2223, %v2223
      %v2345 = vmul.f32 %v2225, %v2225
      %v2346 = vmul.f32 %v2228, %v2228
      %v2347 = vmul.f32 %v2230, %v2230
      %v2348 = vmul.f32 %v2233, %v2233
      %v2349 = vmul.f32 %v2235, %v2235
      %v2350 = vmul.f32 %v2238, %v2238
      %v2351 = vmul.f32 %v2240, %v2240
      %v2352 = vmul.f32 %v2243, %v2243
      %v2353 = vmul.f32 %v2245, %v2245
      %v2354 = vmul.f32 %v2248, %v2248
      %v2355 = vmul.f32 %v2250, %v2250
      %v2356 = vmul.f32 %v2253, %v2253
      %v2357 = vmul.f32 %v2255, %v2255
      %v2358 = vsel %vm1679, %v2326, 0.0
      %v2359 = vsel %vm1679, %v2327, 0.0
      %v2360 = vadd.f32 %v2358, %v2359
      %v2361 = vsel %vm1679, %v2328, 0.0
      %v2362 = vadd.f32 %v2360, %v2361
      %v2363 = vsel %vm1679, %v2329, 0.0
      %v2364 = vadd.f32 %v2362, %v2363
      %v2365 = vsel %vm1679, %v2330, 0.0
      %v2366 = vadd.f32 %v2364, %v2365
      %v2367 = vsel %vm1679, %v2331, 0.0
      %v2368 = vadd.f32 %v2366, %v2367
      %v2369 = vsel %vm1679, %v2332, 0.0
      %v2370 = vadd.f32 %v2368, %v2369
      %v2371 = vsel %vm1679, %v2333, 0.0
      %v2372 = vadd.f32 %v2370, %v2371
      %v2373 = vsel %vm1679, %v2334, 0.0
      %v2374 = vadd.f32 %v2372, %v2373
      %v2375 = vsel %vm1679, %v2335, 0.0
      %v2376 = vadd.f32 %v2374, %v2375
      %v2377 = vsel %vm1679, %v2336, 0.0
      %v2378 = vadd.f32 %v2376, %v2377
      %v2379 = vsel %vm1679, %v2337, 0.0
      %v2380 = vadd.f32 %v2378, %v2379
      %v2381 = vsel %vm1679, %v2338, 0.0
      %v2382 = vadd.f32 %v2380, %v2381
      %v2383 = vsel %vm1679, %v2339, 0.0
      %v2384 = vadd.f32 %v2382, %v2383
      %v2385 = vsel %vm1679, %v2340, 0.0
      %v2386 = vadd.f32 %v2384, %v2385
      %v2387 = vsel %vm1679, %v2341, 0.0
      %v2388 = vadd.f32 %v2386, %v2387
      %v2389 = vsel %vm1679, %v2342, 0.0
      %v2390 = vadd.f32 %v2388, %v2389
      %v2391 = vsel %vm1679, %v2343, 0.0
      %v2392 = vadd.f32 %v2390, %v2391
      %v2393 = vsel %vm1679, %v2344, 0.0
      %v2394 = vadd.f32 %v2392, %v2393
      %v2395 = vsel %vm1679, %v2345, 0.0
      %v2396 = vadd.f32 %v2394, %v2395
      %v2397 = vsel %vm1679, %v2346, 0.0
      %v2398 = vadd.f32 %v2396, %v2397
      %v2399 = vsel %vm1679, %v2347, 0.0
      %v2400 = vadd.f32 %v2398, %v2399
      %v2401 = vsel %vm1679, %v2348, 0.0
      %v2402 = vadd.f32 %v2400, %v2401
      %v2403 = vsel %vm1679, %v2349, 0.0
      %v2404 = vadd.f32 %v2402, %v2403
      %v2405 = vsel %vm1679, %v2350, 0.0
      %v2406 = vadd.f32 %v2404, %v2405
      %v2407 = vsel %vm1679, %v2351, 0.0
      %v2408 = vadd.f32 %v2406, %v2407
      %v2409 = vsel %vm1679, %v2352, 0.0
      %v2410 = vadd.f32 %v2408, %v2409
      %v2411 = vsel %vm1679, %v2353, 0.0
      %v2412 = vadd.f32 %v2410, %v2411
      %v2413 = vsel %vm1679, %v2354, 0.0
      %v2414 = vadd.f32 %v2412, %v2413
      %v2415 = vsel %vm1679, %v2355, 0.0
      %v2416 = vadd.f32 %v2414, %v2415
      %v2417 = vsel %vm1679, %v2356, 0.0
      %v2418 = vadd.f32 %v2416, %v2417
      %v2419 = vsel %vm1679, %v2357, 0.0
      %v2420 = vadd.f32 %v2418, %v2419
      %v2421 = vrot.slane %v2420, 4
      %v2422 = vadd.f32 %v2420, %v2421
      %v2423 = vrot.slane %v2422, 2
      %v2424 = vadd.f32 %v2422, %v2423
      %v2425 = vrot.slane %v2424, 1
      %v2426 = vadd.f32 %v2424, %v2425
      %v2427 = vld [vmem:[%s10] sm:$0xff]
      %v2428 = vld [vmem:[%s10 + $0x8] sm:$0xff]
      %v2429 = vld [vmem:[%s10 + $0x10] sm:$0xff]
      %v2430 = vld [vmem:[%s10 + $0x18] sm:$0xff]
      %v2432 = vsel %vm1679, %v2325, 0
      %2434 = vmatpush.msra.mxu0 0.0
      %2435 = vmatpush.msra.mxu0 0.0
      %2436 = vmatpush.msra.mxu0 0.0
      %2437 = vmatpush.msra.mxu0 0.0
      %2438 = vmatpush.msra.mxu0 0.0
      %2439 = vmatpush.msra.mxu0 0.0
      %2440 = vmatpush.msra.mxu0 0.0
      %2441 = vmatpush.msra.mxu0 0.0
      %2442 = vmatpush.msra.mxu0 0.0
      %2443 = vmatpush.msra.mxu0 0.0
      %2444 = vmatpush.msra.mxu0 0.0
      %2445 = vmatpush.msra.mxu0 0.0
      %2446 = vmatpush.msra.mxu0 %v2430
      %2447 = vmatpush.msra.mxu0 %v2429
      %2448 = vmatpush.msra.mxu0 %v2428
      %2449 = vmatpush.msra.mxu0 %v2427
      %2450 = vmatmul.f32.gmra.mxu0 %v2432
      %v2451 = vpop.f32.mrf.mxu0
      %v2452 = vadd.f32 0.0, %v2451
      %2453 = vdwg.mxu0
      %v2455 = vsel %vm1679, %v2426, 0
      %2457 = vmatpush.msra.mxu0 0.0
      %2458 = vmatpush.msra.mxu0 0.0
      %2459 = vmatpush.msra.mxu0 0.0
      %2460 = vmatpush.msra.mxu0 0.0
      %2461 = vmatpush.msra.mxu0 0.0
      %2462 = vmatpush.msra.mxu0 0.0
      %2463 = vmatpush.msra.mxu0 0.0
      %2464 = vmatpush.msra.mxu0 0.0
      %2465 = vmatpush.msra.mxu0 0.0
      %2466 = vmatpush.msra.mxu0 0.0
      %2467 = vmatpush.msra.mxu0 0.0
      %2468 = vmatpush.msra.mxu0 0.0
      %2469 = vmatpush.msra.mxu0 %v2430
      %2470 = vmatpush.msra.mxu0 %v2429
      %2471 = vmatpush.msra.mxu0 %v2428
      %2472 = vmatpush.msra.mxu0 %v2427
      %2473 = vmatmul.f32.gmra.mxu0 %v2455
      %v2474 = vpop.f32.mrf.mxu0
      %v2475 = vadd.f32 0.0, %v2474
      %2476 = vdwg.mxu0
      %v2477 = vmul.f32 %v2452, %v2452
      %v2478 = vsub.f32 %v2475, %v2477
      %v2479 = vmax.f32 %v2478, 0.0
      %v2480 = vperm.slane %v2452, 0
      %v2481 = vsub.f32 %v2178, %v2480
      %v2482 = vsub.f32 %v2180, %v2480
      %v2483 = vsub.f32 %v2183, %v2480
      %v2484 = vsub.f32 %v2185, %v2480
      %v2485 = vsub.f32 %v2188, %v2480
      %v2486 = vsub.f32 %v2190, %v2480
      %v2487 = vsub.f32 %v2193, %v2480
      %v2488 = vsub.f32 %v2195, %v2480
      %v2489 = vsub.f32 %v2198, %v2480
      %v2490 = vsub.f32 %v2200, %v2480
      %v2491 = vsub.f32 %v2203, %v2480
      %v2492 = vsub.f32 %v2205, %v2480
      %v2493 = vsub.f32 %v2208, %v2480
      %v2494 = vsub.f32 %v2210, %v2480
      %v2495 = vsub.f32 %v2213, %v2480
      %v2496 = vsub.f32 %v2215, %v2480
      %v2497 = vsub.f32 %v2218, %v2480
      %v2498 = vsub.f32 %v2220, %v2480
      %v2499 = vsub.f32 %v2223, %v2480
      %v2500 = vsub.f32 %v2225, %v2480
      %v2501 = vsub.f32 %v2228, %v2480
      %v2502 = vsub.f32 %v2230, %v2480
      %v2503 = vsub.f32 %v2233, %v2480
      %v2504 = vsub.f32 %v2235, %v2480
      %v2505 = vsub.f32 %v2238, %v2480
      %v2506 = vsub.f32 %v2240, %v2480
      %v2507 = vsub.f32 %v2243, %v2480
      %v2508 = vsub.f32 %v2245, %v2480
      %v2509 = vsub.f32 %v2248, %v2480
      %v2510 = vsub.f32 %v2250, %v2480
      %v2511 = vsub.f32 %v2253, %v2480
      %v2512 = vsub.f32 %v2255, %v2480
      %v2513 = vadd.f32 %v2479, 1e-05
      %v2514 = vrsqrt.pop %v2513
      %v2515 = vmul.f32 %v2514, %v2513
      %v2516 = vmul.f32 %v2515, %v2514
      %v2517 = vmul.f32 0.5, %v2516
      %v2518 = vsub.f32 1.5, %v2517
      %v2519 = vmul.f32 %v2514, %v2518
      %vm2520 = vweird.f32 %v2513
      %vm2521 = vweird.f32 %v2514
      %vm2522 = vmor %vm2520, %vm2521
      %v2523 = vsel %vm2522, %v2514, %v2519
      %v2524 = vperm.slane %v2523, 0
      %v2525 = vmul.f32 %v2481, %v2524
      %v2526 = vmul.f32 %v2482, %v2524
      %v2527 = vmul.f32 %v2483, %v2524
      %v2528 = vmul.f32 %v2484, %v2524
      %v2529 = vmul.f32 %v2485, %v2524
      %v2530 = vmul.f32 %v2486, %v2524
      %v2531 = vmul.f32 %v2487, %v2524
      %v2532 = vmul.f32 %v2488, %v2524
      %v2533 = vmul.f32 %v2489, %v2524
      %v2534 = vmul.f32 %v2490, %v2524
      %v2535 = vmul.f32 %v2491, %v2524
      %v2536 = vmul.f32 %v2492, %v2524
      %v2537 = vmul.f32 %v2493, %v2524
      %v2538 = vmul.f32 %v2494, %v2524
      %v2539 = vmul.f32 %v2495, %v2524
      %v2540 = vmul.f32 %v2496, %v2524
      %v2541 = vmul.f32 %v2497, %v2524
      %v2542 = vmul.f32 %v2498, %v2524
      %v2543 = vmul.f32 %v2499, %v2524
      %v2544 = vmul.f32 %v2500, %v2524
      %v2545 = vmul.f32 %v2501, %v2524
      %v2546 = vmul.f32 %v2502, %v2524
      %v2547 = vmul.f32 %v2503, %v2524
      %v2548 = vmul.f32 %v2504, %v2524
      %v2549 = vmul.f32 %v2505, %v2524
      %v2550 = vmul.f32 %v2506, %v2524
      %v2551 = vmul.f32 %v2507, %v2524
      %v2552 = vmul.f32 %v2508, %v2524
      %v2553 = vmul.f32 %v2509, %v2524
      %v2554 = vmul.f32 %v2510, %v2524
      %v2555 = vmul.f32 %v2511, %v2524
      %v2556 = vmul.f32 %v2512, %v2524
      %v2557 = vld [vmem:[%s11] sm:$0x1]
      %v2559 = vperm.slane %v2557, 0
      %v2561 = vmul.f32 %v2525, %v2559
      %v2562 = vmul.f32 %v2526, %v2559
      %v2563 = vmul.f32 %v2527, %v2559
      %v2564 = vmul.f32 %v2528, %v2559
      %v2565 = vmul.f32 %v2529, %v2559
      %v2566 = vmul.f32 %v2530, %v2559
      %v2567 = vmul.f32 %v2531, %v2559
      %v2568 = vmul.f32 %v2532, %v2559
      %v2569 = vmul.f32 %v2533, %v2559
      %v2570 = vmul.f32 %v2534, %v2559
      %v2571 = vmul.f32 %v2535, %v2559
      %v2572 = vmul.f32 %v2536, %v2559
      %v2573 = vmul.f32 %v2537, %v2559
      %v2574 = vmul.f32 %v2538, %v2559
      %v2575 = vmul.f32 %v2539, %v2559
      %v2576 = vmul.f32 %v2540, %v2559
      %v2577 = vmul.f32 %v2541, %v2559
      %v2578 = vmul.f32 %v2542, %v2559
      %v2579 = vmul.f32 %v2543, %v2559
      %v2580 = vmul.f32 %v2544, %v2559
      %v2581 = vmul.f32 %v2545, %v2559
      %v2582 = vmul.f32 %v2546, %v2559
      %v2583 = vmul.f32 %v2547, %v2559
      %v2584 = vmul.f32 %v2548, %v2559
      %v2585 = vmul.f32 %v2549, %v2559
      %v2586 = vmul.f32 %v2550, %v2559
      %v2587 = vmul.f32 %v2551, %v2559
      %v2588 = vmul.f32 %v2552, %v2559
      %v2589 = vmul.f32 %v2553, %v2559
      %v2590 = vmul.f32 %v2554, %v2559
      %v2591 = vmul.f32 %v2555, %v2559
      %v2592 = vmul.f32 %v2556, %v2559
      %v2593 = vld [vmem:[%s12] sm:$0x1]
      %v2595 = vperm.slane %v2593, 0
      %v2597 = vadd.f32 %v2561, %v2595
      %v2598 = vadd.f32 %v2562, %v2595
      %v2599 = vadd.f32 %v2563, %v2595
      %v2600 = vadd.f32 %v2564, %v2595
      %v2601 = vadd.f32 %v2565, %v2595
      %v2602 = vadd.f32 %v2566, %v2595
      %v2603 = vadd.f32 %v2567, %v2595
      %v2604 = vadd.f32 %v2568, %v2595
      %v2605 = vadd.f32 %v2569, %v2595
      %v2606 = vadd.f32 %v2570, %v2595
      %v2607 = vadd.f32 %v2571, %v2595
      %v2608 = vadd.f32 %v2572, %v2595
      %v2609 = vadd.f32 %v2573, %v2595
      %v2610 = vadd.f32 %v2574, %v2595
      %v2611 = vadd.f32 %v2575, %v2595
      %v2612 = vadd.f32 %v2576, %v2595
      %v2613 = vadd.f32 %v2577, %v2595
      %v2614 = vadd.f32 %v2578, %v2595
      %v2615 = vadd.f32 %v2579, %v2595
      %v2616 = vadd.f32 %v2580, %v2595
      %v2617 = vadd.f32 %v2581, %v2595
      %v2618 = vadd.f32 %v2582, %v2595
      %v2619 = vadd.f32 %v2583, %v2595
      %v2620 = vadd.f32 %v2584, %v2595
      %v2621 = vadd.f32 %v2585, %v2595
      %v2622 = vadd.f32 %v2586, %v2595
      %v2623 = vadd.f32 %v2587, %v2595
      %v2624 = vadd.f32 %v2588, %v2595
      %v2625 = vadd.f32 %v2589, %v2595
      %v2626 = vadd.f32 %v2590, %v2595
      %v2627 = vadd.f32 %v2591, %v2595
      %v2628 = vadd.f32 %v2592, %v2595
      %v2629 = vmax.f32 %v2597, 0.0
      %v2630 = vmax.f32 %v2598, 0.0
      %v2631 = vmax.f32 %v2599, 0.0
      %v2632 = vmax.f32 %v2600, 0.0
      %v2633 = vmax.f32 %v2601, 0.0
      %v2634 = vmax.f32 %v2602, 0.0
      %v2635 = vmax.f32 %v2603, 0.0
      %v2636 = vmax.f32 %v2604, 0.0
      %v2637 = vmax.f32 %v2605, 0.0
      %v2638 = vmax.f32 %v2606, 0.0
      %v2639 = vmax.f32 %v2607, 0.0
      %v2640 = vmax.f32 %v2608, 0.0
      %v2641 = vmax.f32 %v2609, 0.0
      %v2642 = vmax.f32 %v2610, 0.0
      %v2643 = vmax.f32 %v2611, 0.0
      %v2644 = vmax.f32 %v2612, 0.0
      %v2645 = vmax.f32 %v2613, 0.0
      %v2646 = vmax.f32 %v2614, 0.0
      %v2647 = vmax.f32 %v2615, 0.0
      %v2648 = vmax.f32 %v2616, 0.0
      %v2649 = vmax.f32 %v2617, 0.0
      %v2650 = vmax.f32 %v2618, 0.0
      %v2651 = vmax.f32 %v2619, 0.0
      %v2652 = vmax.f32 %v2620, 0.0
      %v2653 = vmax.f32 %v2621, 0.0
      %v2654 = vmax.f32 %v2622, 0.0
      %v2655 = vmax.f32 %v2623, 0.0
      %v2656 = vmax.f32 %v2624, 0.0
      %v2657 = vmax.f32 %v2625, 0.0
      %v2658 = vmax.f32 %v2626, 0.0
      %v2659 = vmax.f32 %v2627, 0.0
      %v2660 = vmax.f32 %v2628, 0.0
      %2661 = vst.msk [vmem:[%s440] sm:$0xff] %vm1679, %v2629
      %2662 = vst.msk [vmem:[%s440 + $0x8] sm:$0xff] %vm1679, %v2630
      %2663 = vst.msk [vmem:[%s440 + $0x10] sm:$0xff] %vm1679, %v2631
      %2664 = vst.msk [vmem:[%s440 + $0x18] sm:$0xff] %vm1679, %v2632
      %2665 = vst.msk [vmem:[%s440 + $0x20] sm:$0xff] %vm1679, %v2633
      %2666 = vst.msk [vmem:[%s440 + $0x28] sm:$0xff] %vm1679, %v2634
      %2667 = vst.msk [vmem:[%s440 + $0x30] sm:$0xff] %vm1679, %v2635
      %2668 = vst.msk [vmem:[%s440 + $0x38] sm:$0xff] %vm1679, %v2636
      %2669 = vst.msk [vmem:[%s440 + $0x40] sm:$0xff] %vm1679, %v2637
      %2670 = vst.msk [vmem:[%s440 + $0x48] sm:$0xff] %vm1679, %v2638
      %2671 = vst.msk [vmem:[%s440 + $0x50] sm:$0xff] %vm1679, %v2639
      %2672 = vst.msk [vmem:[%s440 + $0x58] sm:$0xff] %vm1679, %v2640
      %2673 = vst.msk [vmem:[%s440 + $0x60] sm:$0xff] %vm1679, %v2641
      %2674 = vst.msk [vmem:[%s440 + $0x68] sm:$0xff] %vm1679, %v2642
      %2675 = vst.msk [vmem:[%s440 + $0x70] sm:$0xff] %vm1679, %v2643
      %2676 = vst.msk [vmem:[%s440 + $0x78] sm:$0xff] %vm1679, %v2644
      %2677 = vst.msk [vmem:[%s440 + $0x80] sm:$0xff] %vm1679, %v2645
      %2678 = vst.msk [vmem:[%s440 + $0x88] sm:$0xff] %vm1679, %v2646
      %2679 = vst.msk [vmem:[%s440 + $0x90] sm:$0xff] %vm1679, %v2647
      %2680 = vst.msk [vmem:[%s440 + $0x98] sm:$0xff] %vm1679, %v2648
      %2681 = vst.msk [vmem:[%s440 + $0xa0] sm:$0xff] %vm1679, %v2649
      %2682 = vst.msk [vmem:[%s440 + $0xa8] sm:$0xff] %vm1679, %v2650
      %2683 = vst.msk [vmem:[%s440 + $0xb0] sm:$0xff] %vm1679, %v2651
      %2684 = vst.msk [vmem:[%s440 + $0xb8] sm:$0xff] %vm1679, %v2652
      %2685 = vst.msk [vmem:[%s440 + $0xc0] sm:$0xff] %vm1679, %v2653
      %2686 = vst.msk [vmem:[%s440 + $0xc8] sm:$0xff] %vm1679, %v2654
      %2687 = vst.msk [vmem:[%s440 + $0xd0] sm:$0xff] %vm1679, %v2655
      %2688 = vst.msk [vmem:[%s440 + $0xd8] sm:$0xff] %vm1679, %v2656
      %2689 = vst.msk [vmem:[%s440 + $0xe0] sm:$0xff] %vm1679, %v2657
      %2690 = vst.msk [vmem:[%s440 + $0xe8] sm:$0xff] %vm1679, %v2658
      %2691 = vst.msk [vmem:[%s440 + $0xf0] sm:$0xff] %vm1679, %v2659
      %2692 = vst.msk [vmem:[%s440 + $0xf8] sm:$0xff] %vm1679, %v2660
      %p2693 = scmp.lt.s32.totalorder %s24, 2
      %s2694 = scalar_select %p2693, %s24, 2
      %s2695 = smul.addr %s2694, 32
      %s2696 = smul.addr %s2695, 8
      %s2697 = scalar_lea.vmem %s13, %s2696
      // Predicated region
      $region73: #{tpu_custom_call.1} parent=71 // pred_check
        %p2698 = pneg %p320
      $region74: #{tpu_custom_call.1} parent=71 // pred_check_branch
        %2700 = sbr.rel (%p2698) target = $region76
      $region75: #{tpu_custom_call.1} parent=71 // pred_region
        _
      $region76: #{tpu_custom_call.1} parent=71 // pred_fallthru
        _
    $region72: #{tpu_custom_call.1} parent=5 // pred_fallthru
      _
    %p2701 = scmp.le.s32.totalorder 2, %s19
    // Predicated region
    $region77: #{tpu_custom_call.1} parent=5 // pred_check
      %p2702 = pneg %p2701
    $region78: #{tpu_custom_call.1} parent=5 // pred_check_branch
      %2704 = sbr.rel (%p2702) target = $region80
    $region79: #{tpu_custom_call.1} parent=5 // pred_region
      %s2705 = ssub.s32 %s19, 2
      // Predicated region
      $region81: #{tpu_custom_call.1} parent=79 // pred_check
        %p2706 = pneg %p326
      $region82: #{tpu_custom_call.1} parent=79 // pred_check_branch
        %2708 = sbr.rel (%p2706) target = $region84
      $region83: #{tpu_custom_call.1} parent=79 // pred_region
        %p2709 = scmp.lt.s32.totalorder %s25, 2
        %s2710 = scalar_select %p2709, %s25, 2
        %s2711 = smul.addr %s2710, 32
        %s2712 = smul.addr %s2711, 8
        %s2713 = scalar_lea.vmem %s13, %s2712
      $region84: #{tpu_custom_call.1} parent=79 // pred_fallthru
        _
    $region80: #{tpu_custom_call.1} parent=5 // pred_fallthru
      _
  $region6: #{tpu_custom_call.1} parent=0 // loop_footer
    %s23 = sadd.s32 1, %s19
  $region7: #{tpu_custom_call.1} parent=0 // loop_footer_branch
    %18 = sbr.rel target = $region3
  $region8: #{tpu_custom_call.1} parent=0 // loop_exit
    _

</llo_original>
